<compile_context>
chip_gen: v6e
topology: v6e:2x2x1
jax: 0.10.0
libtpu: 0.0.40
codegen_flags: <defaults>
</compile_context>

<pallas_src>
import jax
import jax.numpy as jnp
from jax import lax
from jax.experimental import pallas as pl
from jax.experimental.pallas import tpu as pltpu


def _fuse_bn(gamma, beta, mean, var, eps=1e-5):
    scale = gamma / jnp.sqrt(var + eps)
    bias = beta - mean * scale
    return scale, bias


def _round_up(x, m):
    return (x + m - 1) // m * m


def _pick_row_tile(ho, target):
    # Output-row tile must divide Ho and be a multiple of 8 (sublane tiling of
    # the output block) unless it is the full extent.
    for t in range(min(target, ho), 0, -1):
        if ho % t == 0 and (t % 8 == 0 or t == ho):
            return t
    return ho


def fused_inverted_residual(x_nhwc, w_exp, b_exp, w_dw9, b_dw, w_proj, b_proj,
                            *, stride, use_res, row_tile=8,
                            compute_dtype=jnp.bfloat16,
                            vmem_limit_bytes=48 * 1024 * 1024):
    """Fused expand(1x1) -> depthwise(3x3, stride) -> project(1x1) (+residual).

    Weights already have the inference-mode BN scale folded in:
      w_exp : (Cin, Ch) or None      b_exp : (Ch,) or None
      w_dw9 : (9, Ch)  [kh*3+kw]     b_dw  : (Ch,)
      w_proj: (Ch, Cout)             b_proj: (Cout,)
    """
    N, H, W, Cin = x_nhwc.shape
    expand = w_exp is not None
    Ch = w_dw9.shape[1]
    Cout = w_proj.shape[1]
    assert stride in (1, 2)
    if stride == 2:
        assert H % 2 == 0 and W % 2 == 0, "stride-2 path assumes even H, W"
    assert not use_res or (stride == 1 and Cin == Cout)

    Ho = (H - 1) // stride + 1
    Wo = (W - 1) // stride + 1
    Hp = H + 2                            # 1-pixel zero halo top/bottom
    Wp = _round_up(W + 2, 8)              # 1-pixel halo + sublane alignment
    th = _pick_row_tile(Ho, row_tile)     # output rows per grid step
    grid = (N, Ho // th)
    nrows = stride * th + (3 - stride)    # padded rows needed per tile

    def kernel(*refs):
        i = 0
        x_ref = refs[i]; i += 1
        if expand:
            we_ref, be_ref = refs[i], refs[i + 1]; i += 2
        wd_ref, bd_ref = refs[i], refs[i + 1]; i += 2
        wp_ref, bp_ref = refs[i], refs[i + 1]; i += 2
        o_ref = refs[i]; i += 1
        h_ref = refs[i]                                   # VMEM scratch

        j = pl.program_id(1)
        row0 = pl.multiple_of(j * (stride * th), stride * th)

        # ---- stage 1: 1x1 expand + BN + ReLU6 on this tile's padded row slab
        xs = x_ref[pl.ds(row0, nrows), :, :]              # (nrows, Wp, Cin)
        if expand:
            x2d = xs.reshape(nrows * Wp, Cin).astype(compute_dtype)
            h = jnp.dot(x2d, we_ref[...], preferred_element_type=jnp.float32)
            h = jnp.clip(h + be_ref[...], 0.0, 6.0)
            h = h.reshape(nrows, Wp, Ch)
            # The depthwise conv zero-pads the *hidden* activation, but
            # relu6(bias) != 0 at padded positions -> mask them to zero.
            rid = lax.broadcasted_iota(jnp.int32, (nrows, Wp, 1), 0) + row0
            cid = lax.broadcasted_iota(jnp.int32, (nrows, Wp, 1), 1)
            halo = (rid == 0) | (rid == Hp - 1) | (cid == 0) | (cid >= W + 1)
            h = jnp.where(halo, 0.0, h)
        else:
            h = xs.astype(jnp.float32)                    # halo already zero
        h_ref[...] = h

        # ---- stage 2: 3x3 depthwise + BN + ReLU6, stride applied in-kernel --
        wd = wd_ref[...].astype(jnp.float32)              # (9, Ch)
        acc = jnp.zeros((th, Wo, Ch), jnp.float32)
        for kh in range(3):
            for kw in range(3):
                if stride == 1:
                    tap = h_ref[kh:kh + th, kw:kw + Wo, :]
                else:       # only the rows/cols that land on even outputs
                    tap = h_ref[pl.ds(kh, th, stride), pl.ds(kw, Wo, stride), :]
                acc = acc + tap * wd[kh * 3 + kw]
        y = jnp.clip(acc + bd_ref[...], 0.0, 6.0)         # (th, Wo, Ch)

        # ---- stage 3: 1x1 project + BN (+ residual) -------------------------
        y2d = y.reshape(th * Wo, Ch).astype(compute_dtype)
        z = jnp.dot(y2d, wp_ref[...], preferred_element_type=jnp.float32)
        z = z + bp_ref[...]
        if use_res:
            # residual = this tile's original input rows (already in VMEM)
            res = x_ref[pl.ds(row0 + 1, th), 1:W + 1, :]  # (th, W, Cin)
            z = z + res.reshape(th * Wo, Cin).astype(jnp.float32)
        o_ref[...] = z.astype(o_ref.dtype)                # (th*Wo, Cout)

    # Host-side zero halo of the (small, Cin-channel) input only; the expanded
    # hidden tensor is never padded or written to HBM.
    # TODO(synk): build the 1-pixel halo in-kernel to avoid this extra copy.
    xp = jnp.pad(x_nhwc, ((0, 0), (1, 1), (1, Wp - W - 1), (0, 0)))

    in_specs = [pl.BlockSpec((None, Hp, Wp, Cin), lambda n, j: (n, 0, 0, 0))]
    args = [xp]
    if expand:
        in_specs += [pl.BlockSpec((Cin, Ch), lambda n, j: (0, 0)),
                     pl.BlockSpec((1, Ch), lambda n, j: (0, 0))]
        args += [w_exp.astype(compute_dtype),
                 b_exp.reshape(1, Ch).astype(jnp.float32)]
    in_specs += [pl.BlockSpec((9, Ch), lambda n, j: (0, 0)),
                 pl.BlockSpec((1, Ch), lambda n, j: (0, 0)),
                 pl.BlockSpec((Ch, Cout), lambda n, j: (0, 0)),
                 pl.BlockSpec((1, Cout), lambda n, j: (0, 0))]
    args += [w_dw9.astype(jnp.float32),
             b_dw.reshape(1, Ch).astype(jnp.float32),
             w_proj.astype(compute_dtype),
             b_proj.reshape(1, Cout).astype(jnp.float32)]

    out = pl.pallas_call(
        kernel,
        out_shape=jax.ShapeDtypeStruct((N, Ho * Wo, Cout), x_nhwc.dtype),
        grid_spec=pltpu.PrefetchScalarGridSpec(
            num_scalar_prefetch=0,
            grid=grid,
            in_specs=in_specs,
            out_specs=pl.BlockSpec((None, th * Wo, Cout), lambda n, j: (n, j, 0)),
            scratch_shapes=[pltpu.VMEM((nrows, Wp, Ch), jnp.float32)],
        ),
        compiler_params=pltpu.CompilerParams(
            # batch and row-tile axes are independent -> megacore sharding on
            # v7x; explicit VMEM budget with headroom (64 MiB/TC on v7x,
            # 16 MiB default scoped limit on v5e).
            dimension_semantics=("parallel", "parallel"),
            vmem_limit_bytes=vmem_limit_bytes),
    )(*args)
    return out.reshape(N, Ho, Wo, Cout)


class InvertedResidualPallas:
    """MobileNetV2 InvertedResidual with folded BN, run as one fused kernel."""

    def __init__(self, key, in_channels, out_channels, stride, expand_ratio,
                 dtype=jnp.float32):
        assert stride in (1, 2)
        self.stride = stride
        hidden = int(round(in_channels * expand_ratio))
        self.hidden = hidden
        self.expand = expand_ratio != 1
        self.use_res_connect = stride == 1 and in_channels == out_channels

        keys = jax.random.split(key, 6)

        def bn_params(k, c):
            kg, kb, km, kv = jax.random.split(k, 4)
            gamma = jax.random.uniform(kg, (c,), dtype, 0.5, 1.5)
            beta = jax.random.normal(kb, (c,), dtype) * 0.1
            mean = jax.random.normal(km, (c,), dtype) * 0.1
            var = jax.random.uniform(kv, (c,), dtype, 0.5, 1.5)
            return _fuse_bn(gamma, beta, mean, var)

        # BN scale folded into the conv weights (perf-review item):
        # conv(x; w) * s + b == conv(x; w * s) + b  for 1x1 and depthwise convs.
        if self.expand:
            w = jax.random.normal(keys[0], (in_channels, hidden), dtype) * 0.1
            s, b = bn_params(keys[1], hidden)
            self.w_exp, self.b_exp = w * s[None, :], b
        else:
            self.w_exp, self.b_exp = None, None
        w = jax.random.normal(keys[2], (3, 3, hidden), dtype) * 0.1
        s, b = bn_params(keys[3], hidden)
        self.w_dw9, self.b_dw = (w * s).reshape(9, hidden), b
        w = jax.random.normal(keys[4], (hidden, out_channels), dtype) * 0.1
        s, b = bn_params(keys[5], out_channels)
        self.w_proj, self.b_proj = w * s[None, :], b

    def __call__(self, x_nchw):
        x = jnp.transpose(x_nchw, (0, 2, 3, 1))           # NCHW -> NHWC
        y = fused_inverted_residual(
            x, self.w_exp, self.b_exp, self.w_dw9, self.b_dw,
            self.w_proj, self.b_proj,
            stride=self.stride, use_res=self.use_res_connect)
        return jnp.transpose(y, (0, 3, 1, 2))             # NHWC -> NCHW


# ---------------- pure-JAX reference (matched bf16 matmul operands) ----------

def reference(m, x_nchw, compute_dtype=jnp.bfloat16):
    x = jnp.transpose(x_nchw, (0, 2, 3, 1)).astype(jnp.float32)
    y = x
    if m.expand:
        y = jnp.einsum('nhwc,cd->nhwd', y.astype(compute_dtype),
                       m.w_exp.astype(compute_dtype),
                       preferred_element_type=jnp.float32)
        y = jnp.clip(y + m.b_exp, 0.0, 6.0)
    C = m.hidden
    wdw = m.w_dw9.reshape(3, 3, 1, C)                     # HWIO, groups=C
    y = lax.conv_general_dilated(
        y, wdw, window_strides=(m.stride, m.stride), padding=((1, 1), (1, 1)),
        dimension_numbers=('NHWC', 'HWIO', 'NHWC'), feature_group_count=C,
        precision=lax.Precision.HIGHEST)
    y = jnp.clip(y + m.b_dw, 0.0, 6.0)
    y = jnp.einsum('nhwc,cd->nhwd', y.astype(compute_dtype),
                   m.w_proj.astype(compute_dtype),
                   preferred_element_type=jnp.float32) + m.b_proj
    if m.use_res_connect:
        y = y + x
    return jnp.transpose(y, (0, 3, 1, 2))


if __name__ == "__main__":
    key = jax.random.PRNGKey(0)
    k_param, k_x = jax.random.split(key)

    # in=out=8, stride=1, expand_ratio=3 -> hidden=24, residual connection on.
    module = InvertedResidualPallas(k_param, in_channels=8, out_channels=8,
                                    stride=1, expand_ratio=3)
    x = jax.random.normal(k_x, (2, 8, 16, 16), jnp.float32)  # NCHW, as PyTorch

    out = jax.block_until_ready(module(x))
    ref = jax.block_until_ready(reference(module, x))
    assert out.shape == ref.shape == (2, 8, 16, 16)

    # Both paths use identical bf16 matmul operands with f32 accumulation; the
    # only expected differences are f32 accumulation order plus at most a
    # 1-ULP bf16 re-quantization flip of the intermediate activation.
    diff = jnp.abs(out - ref)
    max_err = float(jnp.max(diff))
    mean_err = float(jnp.mean(diff))
    assert max_err < 2e-2 and mean_err < 1e-3, (
        f"mismatch vs JAX reference: max {max_err}, mean {mean_err}")

    print("KERNEL_OK")
</pallas_src>

<mosaic_0001>
module attributes {stable_mosaic.version = 11 : i64} {
  func.func @kernel(%arg0: i32, %arg1: i32, %arg2: memref<1x18x24x8xf32, #tpu.memory_space<vmem>>, %arg3: memref<8x24xbf16, #tpu.memory_space<vmem>>, %arg4: memref<1x24xf32, #tpu.memory_space<vmem>>, %arg5: memref<9x24xf32, #tpu.memory_space<vmem>>, %arg6: memref<1x24xf32, #tpu.memory_space<vmem>>, %arg7: memref<24x8xbf16, #tpu.memory_space<vmem>>, %arg8: memref<1x8xf32, #tpu.memory_space<vmem>>, %arg9: memref<1x128x8xf32, #tpu.memory_space<vmem>>, %arg10: memref<10x24x24xf32, #tpu.memory_space<vmem>>) attributes {dimension_semantics = [#tpu.dimension_semantics<parallel>, #tpu.dimension_semantics<parallel>], iteration_bounds = array<i64: 2, 2>, scalar_prefetch = 0 : i64, scratch_operands = 1 : i64, tpu.core_type = #tpu.core_type<tc>, window_params = [{transform_indices = @transform_0, window_bounds = array<i64: 1, 18, 24, 8>}, {pipeline_mode = #tpu.pipeline_mode<synchronous>, transform_indices = @transform_1, window_bounds = array<i64: 8, 24>}, {pipeline_mode = #tpu.pipeline_mode<synchronous>, transform_indices = @transform_2, window_bounds = array<i64: 1, 24>}, {pipeline_mode = #tpu.pipeline_mode<synchronous>, transform_indices = @transform_3, window_bounds = array<i64: 9, 24>}, {pipeline_mode = #tpu.pipeline_mode<synchronous>, transform_indices = @transform_4, window_bounds = array<i64: 1, 24>}, {pipeline_mode = #tpu.pipeline_mode<synchronous>, transform_indices = @transform_5, window_bounds = array<i64: 24, 8>}, {pipeline_mode = #tpu.pipeline_mode<synchronous>, transform_indices = @transform_6, window_bounds = array<i64: 1, 8>}, {transform_indices = @transform_7, window_bounds = array<i64: 1, 128, 8>}]} {
    %c8_i32 = arith.constant 8 : i32
    %0 = arith.muli %arg1, %c8_i32 : i32
    %1 = tpu.assume_multiple %0, 8 : i32
    %c0 = arith.constant 0 : index
    %2 = arith.index_cast %1 : i32 to index
    %c0_0 = arith.constant 0 : index
    %c0_1 = arith.constant 0 : index
    %3 = vector.load %arg2[%c0, %2, %c0_0, %c0_1] : memref<1x18x24x8xf32, #tpu.memory_space<vmem>>, vector<1x10x24x8xf32>
    %4 = vector.shape_cast %3 : vector<1x10x24x8xf32> to vector<10x24x8xf32>
    %5 = vector.shape_cast %4 : vector<10x24x8xf32> to vector<240x8xf32>
    %6 = arith.truncf %5 : vector<240x8xf32> to vector<240x8xbf16>
    %c0_2 = arith.constant 0 : index
    %c0_3 = arith.constant 0 : index
    %7 = vector.load %arg3[%c0_2, %c0_3] : memref<8x24xbf16, #tpu.memory_space<vmem>>, vector<8x24xbf16>
    %cst = arith.constant dense<0.000000e+00> : vector<240x24xf32>
    %8 = tpu.matmul %6, %7, %cst {dimension_numbers = #tpu.dot_dimension_numbers<[1], [0], [0], [1], [0, 0, 1, 1], [], []>} : vector<240x8xbf16>, vector<8x24xbf16>, vector<240x24xf32> -> vector<240x24xf32>
    %c0_4 = arith.constant 0 : index
    %c0_5 = arith.constant 0 : index
    %9 = vector.load %arg4[%c0_4, %c0_5] : memref<1x24xf32, #tpu.memory_space<vmem>>, vector<1x24xf32>
    %10 = vector.broadcast %9 : vector<1x24xf32> to vector<240x24xf32>
    %11 = arith.addf %8, %10 : vector<240x24xf32>
    %cst_6 = arith.constant 0.000000e+00 : f32
    %cst_7 = arith.constant 6.000000e+00 : f32
    %12 = vector.broadcast %cst_6 : f32 to vector<240x24xf32>
    %13 = arith.maximumf %12, %11 : vector<240x24xf32>
    %14 = vector.broadcast %cst_7 : f32 to vector<240x24xf32>
    %15 = arith.minimumf %14, %13 : vector<240x24xf32>
    %16 = vector.shape_cast %15 : vector<240x24xf32> to vector<10x24x24xf32>
    %17 = tpu.iota {dimensions = array<i32: 0>} : vector<10x24x1xi32>
    %18 = vector.broadcast %1 : i32 to vector<10x24x1xi32>
    %19 = arith.addi %17, %18 : vector<10x24x1xi32>
    %20 = tpu.iota {dimensions = array<i32: 1>} : vector<10x24x1xi32>
    %c0_i32 = arith.constant 0 : i32
    %21 = vector.broadcast %c0_i32 : i32 to vector<10x24x1xi32>
    %22 = arith.cmpi eq, %19, %21 : vector<10x24x1xi32>
    %c17_i32 = arith.constant 17 : i32
    %23 = vector.broadcast %c17_i32 : i32 to vector<10x24x1xi32>
    %24 = arith.cmpi eq, %19, %23 : vector<10x24x1xi32>
    %25 = arith.ori %22, %24 : vector<10x24x1xi1>
    %c0_i32_8 = arith.constant 0 : i32
    %26 = vector.broadcast %c0_i32_8 : i32 to vector<10x24x1xi32>
    %27 = arith.cmpi eq, %20, %26 : vector<10x24x1xi32>
    %28 = arith.ori %25, %27 : vector<10x24x1xi1>
    %c17_i32_9 = arith.constant 17 : i32
    %29 = vector.broadcast %c17_i32_9 : i32 to vector<10x24x1xi32>
    %30 = arith.cmpi sge, %20, %29 : vector<10x24x1xi32>
    %31 = arith.ori %28, %30 : vector<10x24x1xi1>
    %cst_10 = arith.constant 0.000000e+00 : f32
    %32 = vector.shape_cast %31 : vector<10x24x1xi1> to vector<10x24x1xi1>
    %33 = vector.broadcast %32 : vector<10x24x1xi1> to vector<10x24x24xi1>
    %34 = vector.broadcast %cst_10 : f32 to vector<10x24x24xf32>
    %35 = arith.select %33, %34, %16 : vector<10x24x24xi1>, vector<10x24x24xf32>
    %c0_11 = arith.constant 0 : index
    %c0_12 = arith.constant 0 : index
    %c0_13 = arith.constant 0 : index
    %36 = vector.load %arg10[%c0_11, %c0_12, %c0_13] : memref<10x24x24xf32, #tpu.memory_space<vmem>>, vector<10x24x24xf32>
    tpu.vector_store %arg10[%c0_11, %c0_12, %c0_13], %35 {strides = array<i32>} : memref<10x24x24xf32, #tpu.memory_space<vmem>>, vector<10x24x24xf32>,
    %c0_14 = arith.constant 0 : index
    %c0_15 = arith.constant 0 : index
    %37 = vector.load %arg5[%c0_14, %c0_15] : memref<9x24xf32, #tpu.memory_space<vmem>>, vector<9x24xf32>
    %cst_16 = arith.constant 0.000000e+00 : f32
    %38 = vector.broadcast %cst_16 : f32 to vector<8x16x24xf32>
    %c0_17 = arith.constant 0 : index
    %c0_18 = arith.constant 0 : index
    %c0_19 = arith.constant 0 : index
    %39 = vector.load %arg10[%c0_17, %c0_18, %c0_19] : memref<10x24x24xf32, #tpu.memory_space<vmem>>, vector<8x16x24xf32>
    %40 = vector.extract_strided_slice %37 {offsets = [0, 0], sizes = [1, 24], strides = [1, 1]} : vector<9x24xf32> to vector<1x24xf32>
    %41 = vector.shape_cast %40 : vector<1x24xf32> to vector<24xf32>
    %42 = vector.shape_cast %41 : vector<24xf32> to vector<1x1x24xf32>
    %43 = vector.broadcast %42 : vector<1x1x24xf32> to vector<8x16x24xf32>
    %44 = arith.mulf %39, %43 : vector<8x16x24xf32>
    %45 = arith.addf %38, %44 : vector<8x16x24xf32>
    %c0_20 = arith.constant 0 : index
    %c1 = arith.constant 1 : index
    %c0_21 = arith.constant 0 : index
    %46 = vector.load %arg10[%c0_20, %c1, %c0_21] : memref<10x24x24xf32, #tpu.memory_space<vmem>>, vector<8x16x24xf32>
    %47 = vector.extract_strided_slice %37 {offsets = [1, 0], sizes = [1, 24], strides = [1, 1]} : vector<9x24xf32> to vector<1x24xf32>
    %48 = vector.shape_cast %47 : vector<1x24xf32> to vector<24xf32>
    %49 = vector.shape_cast %48 : vector<24xf32> to vector<1x1x24xf32>
    %50 = vector.broadcast %49 : vector<1x1x24xf32> to vector<8x16x24xf32>
    %51 = arith.mulf %46, %50 : vector<8x16x24xf32>
    %52 = arith.addf %45, %51 : vector<8x16x24xf32>
    %c0_22 = arith.constant 0 : index
    %c2 = arith.constant 2 : index
    %c0_23 = arith.constant 0 : index
    %53 = vector.load %arg10[%c0_22, %c2, %c0_23] : memref<10x24x24xf32, #tpu.memory_space<vmem>>, vector<8x16x24xf32>
    %54 = vector.extract_strided_slice %37 {offsets = [2, 0], sizes = [1, 24], strides = [1, 1]} : vector<9x24xf32> to vector<1x24xf32>
    %55 = vector.shape_cast %54 : vector<1x24xf32> to vector<24xf32>
    %56 = vector.shape_cast %55 : vector<24xf32> to vector<1x1x24xf32>
    %57 = vector.broadcast %56 : vector<1x1x24xf32> to vector<8x16x24xf32>
    %58 = arith.mulf %53, %57 : vector<8x16x24xf32>
    %59 = arith.addf %52, %58 : vector<8x16x24xf32>
    %c1_24 = arith.constant 1 : index
    %c0_25 = arith.constant 0 : index
    %c0_26 = arith.constant 0 : index
    %60 = vector.load %arg10[%c1_24, %c0_25, %c0_26] : memref<10x24x24xf32, #tpu.memory_space<vmem>>, vector<8x16x24xf32>
    %61 = vector.extract_strided_slice %37 {offsets = [3, 0], sizes = [1, 24], strides = [1, 1]} : vector<9x24xf32> to vector<1x24xf32>
    %62 = vector.shape_cast %61 : vector<1x24xf32> to vector<24xf32>
    %63 = vector.shape_cast %62 : vector<24xf32> to vector<1x1x24xf32>
    %64 = vector.broadcast %63 : vector<1x1x24xf32> to vector<8x16x24xf32>
    %65 = arith.mulf %60, %64 : vector<8x16x24xf32>
    %66 = arith.addf %59, %65 : vector<8x16x24xf32>
    %c1_27 = arith.constant 1 : index
    %c1_28 = arith.constant 1 : index
    %c0_29 = arith.constant 0 : index
    %67 = vector.load %arg10[%c1_27, %c1_28, %c0_29] : memref<10x24x24xf32, #tpu.memory_space<vmem>>, vector<8x16x24xf32>
    %68 = vector.extract_strided_slice %37 {offsets = [4, 0], sizes = [1, 24], strides = [1, 1]} : vector<9x24xf32> to vector<1x24xf32>
    %69 = vector.shape_cast %68 : vector<1x24xf32> to vector<24xf32>
    %70 = vector.shape_cast %69 : vector<24xf32> to vector<1x1x24xf32>
    %71 = vector.broadcast %70 : vector<1x1x24xf32> to vector<8x16x24xf32>
    %72 = arith.mulf %67, %71 : vector<8x16x24xf32>
    %73 = arith.addf %66, %72 : vector<8x16x24xf32>
    %c1_30 = arith.constant 1 : index
    %c2_31 = arith.constant 2 : index
    %c0_32 = arith.constant 0 : index
    %74 = vector.load %arg10[%c1_30, %c2_31, %c0_32] : memref<10x24x24xf32, #tpu.memory_space<vmem>>, vector<8x16x24xf32>
    %75 = vector.extract_strided_slice %37 {offsets = [5, 0], sizes = [1, 24], strides = [1, 1]} : vector<9x24xf32> to vector<1x24xf32>
    %76 = vector.shape_cast %75 : vector<1x24xf32> to vector<24xf32>
    %77 = vector.shape_cast %76 : vector<24xf32> to vector<1x1x24xf32>
    %78 = vector.broadcast %77 : vector<1x1x24xf32> to vector<8x16x24xf32>
    %79 = arith.mulf %74, %78 : vector<8x16x24xf32>
    %80 = arith.addf %73, %79 : vector<8x16x24xf32>
    %c2_33 = arith.constant 2 : index
    %c0_34 = arith.constant 0 : index
    %c0_35 = arith.constant 0 : index
    %81 = vector.load %arg10[%c2_33, %c0_34, %c0_35] : memref<10x24x24xf32, #tpu.memory_space<vmem>>, vector<8x16x24xf32>
    %82 = vector.extract_strided_slice %37 {offsets = [6, 0], sizes = [1, 24], strides = [1, 1]} : vector<9x24xf32> to vector<1x24xf32>
    %83 = vector.shape_cast %82 : vector<1x24xf32> to vector<24xf32>
    %84 = vector.shape_cast %83 : vector<24xf32> to vector<1x1x24xf32>
    %85 = vector.broadcast %84 : vector<1x1x24xf32> to vector<8x16x24xf32>
    %86 = arith.mulf %81, %85 : vector<8x16x24xf32>
    %87 = arith.addf %80, %86 : vector<8x16x24xf32>
    %c2_36 = arith.constant 2 : index
    %c1_37 = arith.constant 1 : index
    %c0_38 = arith.constant 0 : index
    %88 = vector.load %arg10[%c2_36, %c1_37, %c0_38] : memref<10x24x24xf32, #tpu.memory_space<vmem>>, vector<8x16x24xf32>
    %89 = vector.extract_strided_slice %37 {offsets = [7, 0], sizes = [1, 24], strides = [1, 1]} : vector<9x24xf32> to vector<1x24xf32>
    %90 = vector.shape_cast %89 : vector<1x24xf32> to vector<24xf32>
    %91 = vector.shape_cast %90 : vector<24xf32> to vector<1x1x24xf32>
    %92 = vector.broadcast %91 : vector<1x1x24xf32> to vector<8x16x24xf32>
    %93 = arith.mulf %88, %92 : vector<8x16x24xf32>
    %94 = arith.addf %87, %93 : vector<8x16x24xf32>
    %c2_39 = arith.constant 2 : index
    %c2_40 = arith.constant 2 : index
    %c0_41 = arith.constant 0 : index
    %95 = vector.load %arg10[%c2_39, %c2_40, %c0_41] : memref<10x24x24xf32, #tpu.memory_space<vmem>>, vector<8x16x24xf32>
    %96 = vector.extract_strided_slice %37 {offsets = [8, 0], sizes = [1, 24], strides = [1, 1]} : vector<9x24xf32> to vector<1x24xf32>
    %97 = vector.shape_cast %96 : vector<1x24xf32> to vector<24xf32>
    %98 = vector.shape_cast %97 : vector<24xf32> to vector<1x1x24xf32>
    %99 = vector.broadcast %98 : vector<1x1x24xf32> to vector<8x16x24xf32>
    %100 = arith.mulf %95, %99 : vector<8x16x24xf32>
    %101 = arith.addf %94, %100 : vector<8x16x24xf32>
    %c0_42 = arith.constant 0 : index
    %c0_43 = arith.constant 0 : index
    %102 = vector.load %arg6[%c0_42, %c0_43] : memref<1x24xf32, #tpu.memory_space<vmem>>, vector<1x24xf32>
    %103 = vector.shape_cast %102 : vector<1x24xf32> to vector<1x1x24xf32>
    %104 = vector.broadcast %103 : vector<1x1x24xf32> to vector<8x16x24xf32>
    %105 = arith.addf %101, %104 : vector<8x16x24xf32>
    %cst_44 = arith.constant 0.000000e+00 : f32
    %cst_45 = arith.constant 6.000000e+00 : f32
    %106 = vector.broadcast %cst_44 : f32 to vector<8x16x24xf32>
    %107 = arith.maximumf %106, %105 : vector<8x16x24xf32>
    %108 = vector.broadcast %cst_45 : f32 to vector<8x16x24xf32>
    %109 = arith.minimumf %108, %107 : vector<8x16x24xf32>
    %110 = vector.shape_cast %109 : vector<8x16x24xf32> to vector<128x24xf32>
    %111 = arith.truncf %110 : vector<128x24xf32> to vector<128x24xbf16>
    %c0_46 = arith.constant 0 : index
    %c0_47 = arith.constant 0 : index
    %112 = vector.load %arg7[%c0_46, %c0_47] : memref<24x8xbf16, #tpu.memory_space<vmem>>, vector<24x8xbf16>
    %cst_48 = arith.constant dense<0.000000e+00> : vector<128x8xf32>
    %113 = tpu.matmul %111, %112, %cst_48 {dimension_numbers = #tpu.dot_dimension_numbers<[1], [0], [0], [1], [0, 0, 1, 1], [], []>} : vector<128x24xbf16>, vector<24x8xbf16>, vector<128x8xf32> -> vector<128x8xf32>
    %c0_49 = arith.constant 0 : index
    %c0_50 = arith.constant 0 : index
    %114 = vector.load %arg8[%c0_49, %c0_50] : memref<1x8xf32, #tpu.memory_space<vmem>>, vector<1x8xf32>
    %115 = vector.broadcast %114 : vector<1x8xf32> to vector<128x8xf32>
    %116 = arith.addf %113, %115 : vector<128x8xf32>
    %c1_i32 = arith.constant 1 : i32
    %117 = arith.addi %1, %c1_i32 : i32
    %c0_51 = arith.constant 0 : index
    %118 = arith.index_cast %117 : i32 to index
    %c1_52 = arith.constant 1 : index
    %c0_53 = arith.constant 0 : index
    %119 = vector.load %arg2[%c0_51, %118, %c1_52, %c0_53] : memref<1x18x24x8xf32, #tpu.memory_space<vmem>>, vector<1x8x16x8xf32>
    %120 = vector.shape_cast %119 : vector<1x8x16x8xf32> to vector<8x16x8xf32>
    %121 = vector.shape_cast %120 : vector<8x16x8xf32> to vector<128x8xf32>
    %122 = arith.addf %116, %121 : vector<128x8xf32>
    %c0_54 = arith.constant 0 : index
    %c0_55 = arith.constant 0 : index
    %c0_56 = arith.constant 0 : index
    %123 = vector.load %arg9[%c0_54, %c0_55, %c0_56] : memref<1x128x8xf32, #tpu.memory_space<vmem>>, vector<1x128x8xf32>
    %124 = vector.shape_cast %123 : vector<1x128x8xf32> to vector<128x8xf32>
    %125 = vector.shape_cast %122 : vector<128x8xf32> to vector<1x128x8xf32>
    tpu.vector_store %arg9[%c0_54, %c0_55, %c0_56], %125 {strides = array<i32>} : memref<1x128x8xf32, #tpu.memory_space<vmem>>, vector<1x128x8xf32>,
    return
  }
  func.func @transform_0(%arg0: i32, %arg1: i32) -> (i32, i32, i32, i32) {
    %c0_i32 = arith.constant 0 : i32
    %c0_i32_0 = arith.constant 0 : i32
    %c0_i32_1 = arith.constant 0 : i32
    %c0_i32_2 = arith.constant 0 : i32
    return %arg0, %c0_i32, %c0_i32_0, %c0_i32_1 : i32, i32, i32, i32
  }
  func.func @transform_1(%arg0: i32, %arg1: i32) -> (i32, i32) {
    %c0_i32 = arith.constant 0 : i32
    %c0_i32_0 = arith.constant 0 : i32
    %c0_i32_1 = arith.constant 0 : i32
    return %c0_i32, %c0_i32_0 : i32, i32
  }
  func.func @transform_2(%arg0: i32, %arg1: i32) -> (i32, i32) {
    %c0_i32 = arith.constant 0 : i32
    %c0_i32_0 = arith.constant 0 : i32
    %c0_i32_1 = arith.constant 0 : i32
    return %c0_i32, %c0_i32_0 : i32, i32
  }
  func.func @transform_3(%arg0: i32, %arg1: i32) -> (i32, i32) {
    %c0_i32 = arith.constant 0 : i32
    %c0_i32_0 = arith.constant 0 : i32
    %c0_i32_1 = arith.constant 0 : i32
    return %c0_i32, %c0_i32_0 : i32, i32
  }
  func.func @transform_4(%arg0: i32, %arg1: i32) -> (i32, i32) {
    %c0_i32 = arith.constant 0 : i32
    %c0_i32_0 = arith.constant 0 : i32
    %c0_i32_1 = arith.constant 0 : i32
    return %c0_i32, %c0_i32_0 : i32, i32
  }
  func.func @transform_5(%arg0: i32, %arg1: i32) -> (i32, i32) {
    %c0_i32 = arith.constant 0 : i32
    %c0_i32_0 = arith.constant 0 : i32
    %c0_i32_1 = arith.constant 0 : i32
    return %c0_i32, %c0_i32_0 : i32, i32
  }
  func.func @transform_6(%arg0: i32, %arg1: i32) -> (i32, i32) {
    %c0_i32 = arith.constant 0 : i32
    %c0_i32_0 = arith.constant 0 : i32
    %c0_i32_1 = arith.constant 0 : i32
    return %c0_i32, %c0_i32_0 : i32, i32
  }
  func.func @transform_7(%arg0: i32, %arg1: i32) -> (i32, i32, i32) {
    %c0_i32 = arith.constant 0 : i32
    %c0_i32_0 = arith.constant 0 : i32
    return %arg0, %arg1, %c0_i32 : i32, i32, i32
  }
}

</mosaic_0001>

<llo_original>
// kernel: tpu_custom_call.1
$region0: #{tpu_custom_call.1}
  #allocation0 [shape = 'u32[]', space=smem, size = 0x4, offset = 0x4, fixed_abs, tag = 'smem constant byte address 0x4 - core index']
  #allocation1 [shape = 'u32[144,128]{1,0:T(1,128)}', space=vmem, size = 0x12000, scoped, tag = 'internal scratch']
  #allocation2 [shape = 'f32[10,24,24]{2,1,0:T(8,128)}', space=vmem, size = 0x1e000, scoped, tag = 'scratch operand']
  %s0 = inlined_call_operand.vmem [shape: f32[2,18,24,8], index: 0, kind: input, shape index: {}]
  %s1 = inlined_call_operand.vmem [shape: bf16[8,24], index: 1, kind: input, shape index: {}]
  %s2 = inlined_call_operand.vmem [shape: f32[1,24], index: 2, kind: input, shape index: {}]
  %s3 = inlined_call_operand.vmem [shape: f32[9,24], index: 3, kind: input, shape index: {}]
  %s4 = inlined_call_operand.vmem [shape: f32[1,24], index: 4, kind: input, shape index: {}]
  %s5 = inlined_call_operand.vmem [shape: bf16[24,8], index: 5, kind: input, shape index: {}]
  %s6 = inlined_call_operand.vmem [shape: f32[1,8], index: 6, kind: input, shape index: {}]
  %s7 = inlined_call_operand.vmem [shape: f32[2,256,8], index: 7, kind: output, shape index: {}]
  %s8 = sld [smem:[#allocation0]]
  $region61: #{tpu_custom_call.1} parent=0
    _
  %s10 = ssub.s32 1, %s8
  %s11 = scalar_select 0, %s10, %s8
  loop: start=0, step=1, limit=6
  $region2: #{tpu_custom_call.1} parent=0 // loop_pre_header
    _
  $region3: #{tpu_custom_call.1} parent=0 // loop_header
    %s13 = sphi 0, %s17
    %p14 = scmp.ge.s32.totalorder %s13, 6
    %s20 = sphi 0, %s32
    %s21 = sphi 0, %s28
    %s22 = sphi 0, %s20
    %s23 = sphi 0, %s21
    %s24 = sphi 0, %s22
    %s25 = sphi 0, %s23
    %s35 = sphi 0, %s37
    %s38 = sphi 0, %s35
    %s39 = sphi 0, %s38
    %s55 = sphi 0, %s39
    %s59 = sphi 0, %s59
    %s61 = sphi 0, %s59
    %s62 = sphi 0, %s61
    %s76 = sphi 0, %s62
    %s80 = sphi 0, %s80
    %s82 = sphi 0, %s80
    %s83 = sphi 0, %s82
    %s97 = sphi 0, %s83
    %s101 = sphi 0, %s101
    %s103 = sphi 0, %s101
    %s104 = sphi 0, %s103
    %s118 = sphi 0, %s104
    %s122 = sphi 0, %s122
    %s124 = sphi 0, %s122
    %s125 = sphi 0, %s124
    %s139 = sphi 0, %s125
    %s143 = sphi 0, %s143
    %s145 = sphi 0, %s143
    %s146 = sphi 0, %s145
    %s160 = sphi 0, %s146
    %s164 = sphi 0, %s164
    %s166 = sphi 0, %s164
    %s167 = sphi 0, %s166
    %s181 = sphi 0, %s167
    %s189 = sphi 0, %s191
    %s192 = sphi 0, %s189
    %s193 = sphi 0, %s192
    %s209 = sphi 0, %s193
  $region4: #{tpu_custom_call.1} parent=0 // loop_header_branch
    %16 = sbr.rel (%p14) target = $region8
  $region5: #{tpu_custom_call.1} parent=0 // loop_body
    %s18 = ssub.s32 %s13, 1
    %s19 = ssub.s32 %s13, 2
    %s26 = sadd.s32 1, %s21
    %p27 = scmp.ge.s32.totalorder %s26, 2
    %s28 = scalar_select %p27, 0, %s26
    %s29 = sadd.s32 1, %s20
    %s30 = scalar_select %p27, %s29, %s20
    %p31 = scmp.ge.s32.totalorder %s30, 2
    %s32 = scalar_select %p31, 0, %s30
    %s33 = ssub.s32 %s20, %s32
    %p34 = scmp.eq.s32.totalorder %s33, 0
    %s36 = sadd.s32 %s35, 1
    %s37 = scalar_select %p34, %s35, %s36
    %p40 = pneg %p34
    %p41 = scmp.eq.s32.totalorder %s13, 3
    %p42 = por %p40, %p41
    %p43 = scmp.ne.s32.totalorder %s35, %s38
    %p44 = scmp.eq.s32.totalorder %s13, 0
    %p45 = por %p43, %p44
    %p46 = scmp.ne.s32.totalorder %s35, %s38
    %p47 = scmp.eq.s32.totalorder %s18, 3
    %p48 = por %p46, %p47
    %p49 = scmp.ne.s32.totalorder %s38, %s39
    %p50 = scmp.eq.s32.totalorder %s18, 0
    %p51 = por %p49, %p50
    %p52 = scmp.ne.s32.totalorder %s38, %s39
    %p53 = scmp.eq.s32.totalorder %s19, 3
    %p54 = por %p52, %p53
    %p56 = scmp.ne.s32.totalorder %s39, %s55
    %p57 = scmp.eq.s32.totalorder %s19, 0
    %p58 = por %p56, %p57
    %s60 = sadd.s32 %s59, 1
    %p63 = scmp.eq.s32.totalorder %s13, 3
    %p64 = scmp.ne.s32.totalorder %s59, %s61
    %p65 = scmp.eq.s32.totalorder %s13, 0
    %p66 = por %p64, %p65
    %p67 = scmp.ne.s32.totalorder %s59, %s61
    %p68 = scmp.eq.s32.totalorder %s18, 3
    %p69 = por %p67, %p68
    %p70 = scmp.ne.s32.totalorder %s61, %s62
    %p71 = scmp.eq.s32.totalorder %s18, 0
    %p72 = por %p70, %p71
    %p73 = scmp.ne.s32.totalorder %s61, %s62
    %p74 = scmp.eq.s32.totalorder %s19, 3
    %p75 = por %p73, %p74
    %p77 = scmp.ne.s32.totalorder %s62, %s76
    %p78 = scmp.eq.s32.totalorder %s19, 0
    %p79 = por %p77, %p78
    %s81 = sadd.s32 %s80, 1
    %p84 = scmp.eq.s32.totalorder %s13, 3
    %p85 = scmp.ne.s32.totalorder %s80, %s82
    %p86 = scmp.eq.s32.totalorder %s13, 0
    %p87 = por %p85, %p86
    %p88 = scmp.ne.s32.totalorder %s80, %s82
    %p89 = scmp.eq.s32.totalorder %s18, 3
    %p90 = por %p88, %p89
    %p91 = scmp.ne.s32.totalorder %s82, %s83
    %p92 = scmp.eq.s32.totalorder %s18, 0
    %p93 = por %p91, %p92
    %p94 = scmp.ne.s32.totalorder %s82, %s83
    %p95 = scmp.eq.s32.totalorder %s19, 3
    %p96 = por %p94, %p95
    %p98 = scmp.ne.s32.totalorder %s83, %s97
    %p99 = scmp.eq.s32.totalorder %s19, 0
    %p100 = por %p98, %p99
    %s102 = sadd.s32 %s101, 1
    %p105 = scmp.eq.s32.totalorder %s13, 3
    %p106 = scmp.ne.s32.totalorder %s101, %s103
    %p107 = scmp.eq.s32.totalorder %s13, 0
    %p108 = por %p106, %p107
    %p109 = scmp.ne.s32.totalorder %s101, %s103
    %p110 = scmp.eq.s32.totalorder %s18, 3
    %p111 = por %p109, %p110
    %p112 = scmp.ne.s32.totalorder %s103, %s104
    %p113 = scmp.eq.s32.totalorder %s18, 0
    %p114 = por %p112, %p113
    %p115 = scmp.ne.s32.totalorder %s103, %s104
    %p116 = scmp.eq.s32.totalorder %s19, 3
    %p117 = por %p115, %p116
    %p119 = scmp.ne.s32.totalorder %s104, %s118
    %p120 = scmp.eq.s32.totalorder %s19, 0
    %p121 = por %p119, %p120
    %s123 = sadd.s32 %s122, 1
    %p126 = scmp.eq.s32.totalorder %s13, 3
    %p127 = scmp.ne.s32.totalorder %s122, %s124
    %p128 = scmp.eq.s32.totalorder %s13, 0
    %p129 = por %p127, %p128
    %p130 = scmp.ne.s32.totalorder %s122, %s124
    %p131 = scmp.eq.s32.totalorder %s18, 3
    %p132 = por %p130, %p131
    %p133 = scmp.ne.s32.totalorder %s124, %s125
    %p134 = scmp.eq.s32.totalorder %s18, 0
    %p135 = por %p133, %p134
    %p136 = scmp.ne.s32.totalorder %s124, %s125
    %p137 = scmp.eq.s32.totalorder %s19, 3
    %p138 = por %p136, %p137
    %p140 = scmp.ne.s32.totalorder %s125, %s139
    %p141 = scmp.eq.s32.totalorder %s19, 0
    %p142 = por %p140, %p141
    %s144 = sadd.s32 %s143, 1
    %p147 = scmp.eq.s32.totalorder %s13, 3
    %p148 = scmp.ne.s32.totalorder %s143, %s145
    %p149 = scmp.eq.s32.totalorder %s13, 0
    %p150 = por %p148, %p149
    %p151 = scmp.ne.s32.totalorder %s143, %s145
    %p152 = scmp.eq.s32.totalorder %s18, 3
    %p153 = por %p151, %p152
    %p154 = scmp.ne.s32.totalorder %s145, %s146
    %p155 = scmp.eq.s32.totalorder %s18, 0
    %p156 = por %p154, %p155
    %p157 = scmp.ne.s32.totalorder %s145, %s146
    %p158 = scmp.eq.s32.totalorder %s19, 3
    %p159 = por %p157, %p158
    %p161 = scmp.ne.s32.totalorder %s146, %s160
    %p162 = scmp.eq.s32.totalorder %s19, 0
    %p163 = por %p161, %p162
    %s165 = sadd.s32 %s164, 1
    %p168 = scmp.eq.s32.totalorder %s13, 3
    %p169 = scmp.ne.s32.totalorder %s164, %s166
    %p170 = scmp.eq.s32.totalorder %s13, 0
    %p171 = por %p169, %p170
    %p172 = scmp.ne.s32.totalorder %s164, %s166
    %p173 = scmp.eq.s32.totalorder %s18, 3
    %p174 = por %p172, %p173
    %p175 = scmp.ne.s32.totalorder %s166, %s167
    %p176 = scmp.eq.s32.totalorder %s18, 0
    %p177 = por %p175, %p176
    %p178 = scmp.ne.s32.totalorder %s166, %s167
    %p179 = scmp.eq.s32.totalorder %s19, 3
    %p180 = por %p178, %p179
    %p182 = scmp.ne.s32.totalorder %s167, %s181
    %p183 = scmp.eq.s32.totalorder %s19, 0
    %p184 = por %p182, %p183
    %s185 = ssub.s32 %s20, %s32
    %s186 = ssub.s32 %s21, %s28
    %s187 = sor.u32 %s185, %s186
    %p188 = scmp.eq.s32.totalorder %s187, 0
    %s190 = sadd.s32 %s189, 1
    %s191 = scalar_select %p188, %s189, %s190
    %p194 = pneg %p188
    %p195 = scmp.eq.s32.totalorder %s13, 3
    %p196 = por %p194, %p195
    %p197 = scmp.ne.s32.totalorder %s189, %s192
    %p198 = scmp.eq.s32.totalorder %s13, 0
    %p199 = por %p197, %p198
    %p200 = scmp.ne.s32.totalorder %s189, %s192
    %p201 = scmp.eq.s32.totalorder %s18, 3
    %p202 = por %p200, %p201
    %p203 = scmp.ne.s32.totalorder %s192, %s193
    %p204 = scmp.eq.s32.totalorder %s18, 0
    %p205 = por %p203, %p204
    %p206 = scmp.ne.s32.totalorder %s192, %s193
    %p207 = scmp.eq.s32.totalorder %s19, 3
    %p208 = por %p206, %p207
    %p210 = scmp.ne.s32.totalorder %s193, %s209
    %p211 = scmp.eq.s32.totalorder %s19, 0
    %p212 = por %p210, %p211
    %p213 = scmp.le.s32.totalorder 1, %s13
    %p214 = scmp.lt.s32.totalorder %s13, 5
    %p215 = pnand %p213, %p214
    %p216 = pneg %p215
    // Predicated region
    $region9: #{tpu_custom_call.1} parent=5 // pred_check
      _
    $region10: #{tpu_custom_call.1} parent=5 // pred_check_branch
      %218 = sbr.rel (%p215) target = $region12
    $region11: #{tpu_custom_call.1} parent=5 // pred_region
      %s219 = ssub.s32 %s13, 1
      // Predicated region
      $region13: #{tpu_custom_call.1} parent=11 // pred_check
        %p220 = pneg %p72
      $region14: #{tpu_custom_call.1} parent=11 // pred_check_branch
        %222 = sbr.rel (%p220) target = $region16
      $region15: #{tpu_custom_call.1} parent=11 // pred_region
        _
      $region16: #{tpu_custom_call.1} parent=11 // pred_fallthru
        _
      // Predicated region
      $region17: #{tpu_custom_call.1} parent=11 // pred_check
        %p223 = pneg %p93
      $region18: #{tpu_custom_call.1} parent=11 // pred_check_branch
        %225 = sbr.rel (%p223) target = $region20
      $region19: #{tpu_custom_call.1} parent=11 // pred_region
        _
      $region20: #{tpu_custom_call.1} parent=11 // pred_fallthru
        _
      // Predicated region
      $region21: #{tpu_custom_call.1} parent=11 // pred_check
        %p226 = pneg %p114
      $region22: #{tpu_custom_call.1} parent=11 // pred_check_branch
        %228 = sbr.rel (%p226) target = $region24
      $region23: #{tpu_custom_call.1} parent=11 // pred_region
        _
      $region24: #{tpu_custom_call.1} parent=11 // pred_fallthru
        _
      // Predicated region
      $region25: #{tpu_custom_call.1} parent=11 // pred_check
        %p229 = pneg %p135
      $region26: #{tpu_custom_call.1} parent=11 // pred_check_branch
        %231 = sbr.rel (%p229) target = $region28
      $region27: #{tpu_custom_call.1} parent=11 // pred_region
        _
      $region28: #{tpu_custom_call.1} parent=11 // pred_fallthru
        _
      // Predicated region
      $region29: #{tpu_custom_call.1} parent=11 // pred_check
        %p232 = pneg %p156
      $region30: #{tpu_custom_call.1} parent=11 // pred_check_branch
        %234 = sbr.rel (%p232) target = $region32
      $region31: #{tpu_custom_call.1} parent=11 // pred_region
        _
      $region32: #{tpu_custom_call.1} parent=11 // pred_fallthru
        _
      // Predicated region
      $region33: #{tpu_custom_call.1} parent=11 // pred_check
        %p235 = pneg %p177
      $region34: #{tpu_custom_call.1} parent=11 // pred_check_branch
        %237 = sbr.rel (%p235) target = $region36
      $region35: #{tpu_custom_call.1} parent=11 // pred_region
        _
      $region36: #{tpu_custom_call.1} parent=11 // pred_fallthru
        _
    $region12: #{tpu_custom_call.1} parent=5 // pred_fallthru
      _
    %p238 = scmp.lt.s32.totalorder %s13, 4
    // Predicated region
    $region37: #{tpu_custom_call.1} parent=5 // pred_check
      %p239 = pneg %p238
    $region38: #{tpu_custom_call.1} parent=5 // pred_check_branch
      %241 = sbr.rel (%p239) target = $region40
    $region39: #{tpu_custom_call.1} parent=5 // pred_region
      // Predicated region
      $region41: #{tpu_custom_call.1} parent=39 // pred_check
        %p242 = pneg %p45
      $region42: #{tpu_custom_call.1} parent=39 // pred_check_branch
        %244 = sbr.rel (%p242) target = $region44
      $region43: #{tpu_custom_call.1} parent=39 // pred_region
        %p245 = scmp.lt.s32.totalorder %s20, 1
        %s246 = scalar_select %p245, %s20, 1
        %s247 = smul.addr %s246, 54
        %s248 = smul.addr %s247, 8
        %s249 = scalar_lea.vmem %s0, %s248
      $region44: #{tpu_custom_call.1} parent=39 // pred_fallthru
        _
    $region40: #{tpu_custom_call.1} parent=5 // pred_fallthru
      _
    %p250 = scmp.le.s32.totalorder 1, %s13
    %p251 = scmp.lt.s32.totalorder %s13, 5
    %p252 = pnand %p250, %p251
    %p253 = pneg %p252
    // Predicated region
    $region45: #{tpu_custom_call.1} parent=5 // pred_check
      _
    $region46: #{tpu_custom_call.1} parent=5 // pred_check_branch
      %255 = sbr.rel (%p252) target = $region48
    $region47: #{tpu_custom_call.1} parent=5 // pred_region
      %s256 = ssub.s32 %s13, 1
      %p257 = scmp.lt.s32.totalorder %s22, 1
      %s258 = scalar_select %p257, %s22, 1
      %s259 = smul.addr %s258, 54
      %s260 = smul.addr %s259, 8
      %s261 = scalar_lea.vmem %s0, %s260
      %p262 = pneg %p51
      %p263 = pneg %p48
      %p264 = pneg %p72
      %p265 = pneg %p69
      %p266 = pneg %p93
      %p267 = pneg %p90
      %p268 = pneg %p114
      %p269 = pneg %p111
      %p270 = pneg %p135
      %p271 = pneg %p132
      %p272 = pneg %p156
      %p273 = pneg %p153
      %p274 = pneg %p177
      %p275 = pneg %p174
      %p276 = pneg %p205
      %p277 = pneg %p202
      %s278 = smul.u32 16, %s23
      %p279 = scmp.lt.s32.totalorder %s22, 1
      %s280 = scalar_select %p279, %s22, 1
      %p281 = scmp.lt.s32.totalorder %s278, 31
      %s282 = scalar_select %p281, %s278, 31
      %s283 = smul.addr %s280, 32
      %s284 = sadd.s32 %s282, %s283
      %s285 = smul.addr %s284, 8
      %s286 = scalar_lea.vmem %s7, %s285
      %p287 = scmp.lt.s32.totalorder %s22, 1
      %s288 = scalar_select %p287, %s22, 1
      %s289 = smul.addr %s288, 54
      %s290 = smul.addr %s289, 8
      %s291 = scalar_lea.vmem %s0, %s290
      %s292 = smul.u32 16, %s23
      %p293 = scmp.lt.s32.totalorder %s22, 1
      %s294 = scalar_select %p293, %s22, 1
      %p295 = scmp.lt.s32.totalorder %s292, 31
      %s296 = scalar_select %p295, %s292, 31
      %s297 = smul.addr %s294, 32
      %s298 = sadd.s32 %s296, %s297
      %s299 = smul.addr %s298, 8
      %s300 = scalar_lea.vmem %s7, %s299
      %s301 = smul.u32 16, %s23
      %s303 = smul.u32 %s23, 8
      %s304 = smul.u32 %s303, 24
      %s305 = scalar_lea.vmem %s291, %s304
      %v306 = vld [vmem:[%s305] sm:$0xff]
      %v307 = vld [vmem:[%s305 + $0x8] sm:$0xff]
      %v308 = vld [vmem:[%s305 + $0x10] sm:$0xff]
      %v309 = vld [vmem:[%s305 + $0x18] sm:$0xff]
      %v310 = vld [vmem:[%s305 + $0x20] sm:$0xff]
      %v311 = vld [vmem:[%s305 + $0x28] sm:$0xff]
      %v312 = vld [vmem:[%s305 + $0x30] sm:$0xff]
      %v313 = vld [vmem:[%s305 + $0x38] sm:$0xff]
      %v314 = vld [vmem:[%s305 + $0x40] sm:$0xff]
      %v315 = vld [vmem:[%s305 + $0x48] sm:$0xff]
      %v316 = vld [vmem:[%s305 + $0x50] sm:$0xff]
      %v317 = vld [vmem:[%s305 + $0x58] sm:$0xff]
      %v318 = vld [vmem:[%s305 + $0x60] sm:$0xff]
      %v319 = vld [vmem:[%s305 + $0x68] sm:$0xff]
      %v320 = vld [vmem:[%s305 + $0x70] sm:$0xff]
      %v321 = vld [vmem:[%s305 + $0x78] sm:$0xff]
      %v322 = vld [vmem:[%s305 + $0x80] sm:$0xff]
      %v323 = vld [vmem:[%s305 + $0x88] sm:$0xff]
      %v324 = vld [vmem:[%s305 + $0x90] sm:$0xff]
      %v325 = vld [vmem:[%s305 + $0x98] sm:$0xff]
      %v326 = vld [vmem:[%s305 + $0xa0] sm:$0xff]
      %v327 = vld [vmem:[%s305 + $0xa8] sm:$0xff]
      %v328 = vld [vmem:[%s305 + $0xb0] sm:$0xff]
      %v329 = vld [vmem:[%s305 + $0xb8] sm:$0xff]
      %v330 = vld [vmem:[%s305 + $0xc0] sm:$0xff]
      %v331 = vld [vmem:[%s305 + $0xc8] sm:$0xff]
      %v332 = vld [vmem:[%s305 + $0xd0] sm:$0xff]
      %v333 = vld [vmem:[%s305 + $0xd8] sm:$0xff]
      %v334 = vld [vmem:[%s305 + $0xe0] sm:$0xff]
      %v335 = vld [vmem:[%s305 + $0xe8] sm:$0xff]
      %v336 = vpack.c.bf16 %v307, %v306
      %v337 = vpack.c.bf16 %v309, %v308
      %v338 = vpack.c.bf16 %v311, %v310
      %v339 = vpack.c.bf16 %v313, %v312
      %v340 = vpack.c.bf16 %v315, %v314
      %v341 = vpack.c.bf16 %v317, %v316
      %v342 = vpack.c.bf16 %v319, %v318
      %v343 = vpack.c.bf16 %v321, %v320
      %v344 = vpack.c.bf16 %v323, %v322
      %v345 = vpack.c.bf16 %v325, %v324
      %v346 = vpack.c.bf16 %v327, %v326
      %v347 = vpack.c.bf16 %v329, %v328
      %v348 = vpack.c.bf16 %v331, %v330
      %v349 = vpack.c.bf16 %v333, %v332
      %v350 = vpack.c.bf16 %v335, %v334
      %v351 = vld [vmem:[%s1] sm:$0xf]
      %v352 = vld [vmem:[%s2] sm:$0x1]
      %v354 = vlaneseq
      %v355 = vshrl.u32 %v354, 7
      %v356 = vsub.s32 0, %v355
      %v357 = vrot.slane %v352, %v356
      %vm359 = vcmask 64512
      %v361 = vsel %vm359, %v336, 0
      %v364 = vsel %vm359, %v337, 0
      %v367 = vsel %vm359, %v338, 0
      %v370 = vsel %vm359, %v339, 0
      %v373 = vsel %vm359, %v340, 0
      %v376 = vsel %vm359, %v341, 0
      %v379 = vsel %vm359, %v342, 0
      %v382 = vsel %vm359, %v343, 0
      %v385 = vsel %vm359, %v344, 0
      %v388 = vsel %vm359, %v345, 0
      %v391 = vsel %vm359, %v346, 0
      %v394 = vsel %vm359, %v347, 0
      %v397 = vsel %vm359, %v348, 0
      %v400 = vsel %vm359, %v349, 0
      %v403 = vsel %vm359, %v350, 0
      %vm405 = vcmask 1043456
      %v407 = vsel %vm405, %v351, 0
      %409 = vmatprep.subr.bf16.mxu0 0
      %410 = vmatpush1.bf16.msra.mxu0 0
      %411 = vmatprep.subr.bf16.mxu0 0
      %412 = vmatpush1.bf16.msra.mxu0 0
      %413 = vmatprep.subr.bf16.mxu0 0
      %414 = vmatpush1.bf16.msra.mxu0 0
      %415 = vmatprep.subr.bf16.mxu0 0
      %416 = vmatpush1.bf16.msra.mxu0 0
      %417 = vmatprep.subr.bf16.mxu0 0
      %418 = vmatpush1.bf16.msra.mxu0 0
      %419 = vmatprep.subr.bf16.mxu0 0
      %420 = vmatpush1.bf16.msra.mxu0 0
      %421 = vmatprep.subr.bf16.mxu0 0
      %422 = vmatpush1.bf16.msra.mxu0 0
      %423 = vmatprep.subr.bf16.mxu0 0
      %424 = vmatpush1.bf16.msra.mxu0 %v407
      %425 = vmatprep.subr.bf16.mxu0 0
      %426 = vmatpush2.bf16.msra.mxu0 0
      %427 = vmatprep.subr.bf16.mxu0 0
      %428 = vmatpush2.bf16.msra.mxu0 0
      %429 = vmatprep.subr.bf16.mxu0 0
      %430 = vmatpush2.bf16.msra.mxu0 0
      %431 = vmatprep.subr.bf16.mxu0 0
      %432 = vmatpush2.bf16.msra.mxu0 0
      %433 = vmatprep.subr.bf16.mxu0 0
      %434 = vmatpush2.bf16.msra.mxu0 0
      %435 = vmatprep.subr.bf16.mxu0 0
      %436 = vmatpush2.bf16.msra.mxu0 0
      %437 = vmatprep.subr.bf16.mxu0 0
      %438 = vmatpush2.bf16.msra.mxu0 0
      %439 = vmatprep.subr.bf16.mxu0 0
      %440 = vmatpush2.bf16.msra.mxu0 0
      %441 = vmatprep.mubr.bf16.mxu0 0
      %442 = vmatmul.mubr.bf16.gmra.mxu0 %v361
      %v443 = vpop.f32.mrf.mxu0
      %v444 = vadd.f32 %v357, %v443
      %v445 = vpop.f32.mrf.mxu0
      %v446 = vpop.f32.mrf.mxu0
      %v447 = vadd.f32 %v357, %v446
      %v448 = vpop.f32.mrf.mxu0
      %449 = vmatprep.mubr.bf16.mxu0 0
      %450 = vmatmul.mubr.bf16.gmra.mxu0 %v364
      %v451 = vpop.f32.mrf.mxu0
      %v452 = vadd.f32 %v357, %v451
      %v453 = vpop.f32.mrf.mxu0
      %v454 = vpop.f32.mrf.mxu0
      %v455 = vadd.f32 %v357, %v454
      %v456 = vpop.f32.mrf.mxu0
      %457 = vmatprep.mubr.bf16.mxu0 0
      %458 = vmatmul.mubr.bf16.gmra.mxu0 %v367
      %v459 = vpop.f32.mrf.mxu0
      %v460 = vadd.f32 %v357, %v459
      %v461 = vpop.f32.mrf.mxu0
      %v462 = vpop.f32.mrf.mxu0
      %v463 = vadd.f32 %v357, %v462
      %v464 = vpop.f32.mrf.mxu0
      %465 = vmatprep.mubr.bf16.mxu0 0
      %466 = vmatmul.mubr.bf16.gmra.mxu0 %v370
      %v467 = vpop.f32.mrf.mxu0
      %v468 = vadd.f32 %v357, %v467
      %v469 = vpop.f32.mrf.mxu0
      %v470 = vpop.f32.mrf.mxu0
      %v471 = vadd.f32 %v357, %v470
      %v472 = vpop.f32.mrf.mxu0
      %473 = vmatprep.mubr.bf16.mxu0 0
      %474 = vmatmul.mubr.bf16.gmra.mxu0 %v373
      %v475 = vpop.f32.mrf.mxu0
      %v476 = vadd.f32 %v357, %v475
      %v477 = vpop.f32.mrf.mxu0
      %v478 = vpop.f32.mrf.mxu0
      %v479 = vadd.f32 %v357, %v478
      %v480 = vpop.f32.mrf.mxu0
      %481 = vmatprep.mubr.bf16.mxu0 0
      %482 = vmatmul.mubr.bf16.gmra.mxu0 %v376
      %v483 = vpop.f32.mrf.mxu0
      %v484 = vadd.f32 %v357, %v483
      %v485 = vpop.f32.mrf.mxu0
      %v486 = vpop.f32.mrf.mxu0
      %v487 = vadd.f32 %v357, %v486
      %v488 = vpop.f32.mrf.mxu0
      %489 = vmatprep.mubr.bf16.mxu0 0
      %490 = vmatmul.mubr.bf16.gmra.mxu0 %v379
      %v491 = vpop.f32.mrf.mxu0
      %v492 = vadd.f32 %v357, %v491
      %v493 = vpop.f32.mrf.mxu0
      %v494 = vpop.f32.mrf.mxu0
      %v495 = vadd.f32 %v357, %v494
      %v496 = vpop.f32.mrf.mxu0
      %497 = vmatprep.mubr.bf16.mxu0 0
      %498 = vmatmul.mubr.bf16.gmra.mxu0 %v382
      %v499 = vpop.f32.mrf.mxu0
      %v500 = vadd.f32 %v357, %v499
      %v501 = vpop.f32.mrf.mxu0
      %v502 = vpop.f32.mrf.mxu0
      %v503 = vadd.f32 %v357, %v502
      %v504 = vpop.f32.mrf.mxu0
      %505 = vmatprep.mubr.bf16.mxu0 0
      %506 = vmatmul.mubr.bf16.gmra.mxu0 %v385
      %v507 = vpop.f32.mrf.mxu0
      %v508 = vadd.f32 %v357, %v507
      %v509 = vpop.f32.mrf.mxu0
      %v510 = vpop.f32.mrf.mxu0
      %v511 = vadd.f32 %v357, %v510
      %v512 = vpop.f32.mrf.mxu0
      %513 = vmatprep.mubr.bf16.mxu0 0
      %514 = vmatmul.mubr.bf16.gmra.mxu0 %v388
      %v515 = vpop.f32.mrf.mxu0
      %v516 = vadd.f32 %v357, %v515
      %v517 = vpop.f32.mrf.mxu0
      %v518 = vpop.f32.mrf.mxu0
      %v519 = vadd.f32 %v357, %v518
      %v520 = vpop.f32.mrf.mxu0
      %521 = vmatprep.mubr.bf16.mxu0 0
      %522 = vmatmul.mubr.bf16.gmra.mxu0 %v391
      %v523 = vpop.f32.mrf.mxu0
      %v524 = vadd.f32 %v357, %v523
      %v525 = vpop.f32.mrf.mxu0
      %v526 = vpop.f32.mrf.mxu0
      %v527 = vadd.f32 %v357, %v526
      %v528 = vpop.f32.mrf.mxu0
      %529 = vmatprep.mubr.bf16.mxu0 0
      %530 = vmatmul.mubr.bf16.gmra.mxu0 %v394
      %v531 = vpop.f32.mrf.mxu0
      %v532 = vadd.f32 %v357, %v531
      %v533 = vpop.f32.mrf.mxu0
      %v534 = vpop.f32.mrf.mxu0
      %v535 = vadd.f32 %v357, %v534
      %v536 = vpop.f32.mrf.mxu0
      %537 = vmatprep.mubr.bf16.mxu0 0
      %538 = vmatmul.mubr.bf16.gmra.mxu0 %v397
      %v539 = vpop.f32.mrf.mxu0
      %v540 = vadd.f32 %v357, %v539
      %v541 = vpop.f32.mrf.mxu0
      %v542 = vpop.f32.mrf.mxu0
      %v543 = vadd.f32 %v357, %v542
      %v544 = vpop.f32.mrf.mxu0
      %545 = vmatprep.mubr.bf16.mxu0 0
      %546 = vmatmul.mubr.bf16.gmra.mxu0 %v400
      %v547 = vpop.f32.mrf.mxu0
      %v548 = vadd.f32 %v357, %v547
      %v549 = vpop.f32.mrf.mxu0
      %v550 = vpop.f32.mrf.mxu0
      %v551 = vadd.f32 %v357, %v550
      %v552 = vpop.f32.mrf.mxu0
      %553 = vmatprep.mubr.bf16.mxu0 0
      %554 = vmatmul.mubr.bf16.gmra.mxu0 %v403
      %v555 = vpop.f32.mrf.mxu0
      %v556 = vadd.f32 %v357, %v555
      %v557 = vpop.f32.mrf.mxu0
      %v558 = vpop.f32.mrf.mxu0
      %v559 = vadd.f32 %v357, %v558
      %v560 = vpop.f32.mrf.mxu0
      %561 = vdwg.mxu0
      %v562 = vmax.f32 %v444, 0.0
      %v563 = vmax.f32 %v447, 0.0
      %v564 = vmax.f32 %v452, 0.0
      %v565 = vmax.f32 %v455, 0.0
      %v566 = vmax.f32 %v460, 0.0
      %v567 = vmax.f32 %v463, 0.0
      %v568 = vmax.f32 %v468, 0.0
      %v569 = vmax.f32 %v471, 0.0
      %v570 = vmax.f32 %v476, 0.0
      %v571 = vmax.f32 %v479, 0.0
      %v572 = vmax.f32 %v484, 0.0
      %v573 = vmax.f32 %v487, 0.0
      %v574 = vmax.f32 %v492, 0.0
      %v575 = vmax.f32 %v495, 0.0
      %v576 = vmax.f32 %v500, 0.0
      %v577 = vmax.f32 %v503, 0.0
      %v578 = vmax.f32 %v508, 0.0
      %v579 = vmax.f32 %v511, 0.0
      %v580 = vmax.f32 %v516, 0.0
      %v581 = vmax.f32 %v519, 0.0
      %v582 = vmax.f32 %v524, 0.0
      %v583 = vmax.f32 %v527, 0.0
      %v584 = vmax.f32 %v532, 0.0
      %v585 = vmax.f32 %v535, 0.0
      %v586 = vmax.f32 %v540, 0.0
      %v587 = vmax.f32 %v543, 0.0
      %v588 = vmax.f32 %v548, 0.0
      %v589 = vmax.f32 %v551, 0.0
      %v590 = vmax.f32 %v556, 0.0
      %v591 = vmax.f32 %v559, 0.0
      %v592 = vmin.f32 %v562, 6.0
      %v593 = vmin.f32 %v563, 6.0
      %v594 = vmin.f32 %v564, 6.0
      %v595 = vmin.f32 %v565, 6.0
      %v596 = vmin.f32 %v566, 6.0
      %v597 = vmin.f32 %v567, 6.0
      %v598 = vmin.f32 %v568, 6.0
      %v599 = vmin.f32 %v569, 6.0
      %v600 = vmin.f32 %v570, 6.0
      %v601 = vmin.f32 %v571, 6.0
      %v602 = vmin.f32 %v572, 6.0
      %v603 = vmin.f32 %v573, 6.0
      %v604 = vmin.f32 %v574, 6.0
      %v605 = vmin.f32 %v575, 6.0
      %v606 = vmin.f32 %v576, 6.0
      %v607 = vmin.f32 %v577, 6.0
      %v608 = vmin.f32 %v578, 6.0
      %v609 = vmin.f32 %v579, 6.0
      %v610 = vmin.f32 %v580, 6.0
      %v611 = vmin.f32 %v581, 6.0
      %v612 = vmin.f32 %v582, 6.0
      %v613 = vmin.f32 %v583, 6.0
      %v614 = vmin.f32 %v584, 6.0
      %v615 = vmin.f32 %v585, 6.0
      %v616 = vmin.f32 %v586, 6.0
      %v617 = vmin.f32 %v587, 6.0
      %v618 = vmin.f32 %v588, 6.0
      %v619 = vmin.f32 %v589, 6.0
      %v620 = vmin.f32 %v590, 6.0
      %v621 = vmin.f32 %v591, 6.0
      %v622 = vstv %s303
      %v623 = vadd.s32 %v622, 1
      %v624 = vadd.s32 %v622, 2
      %v625 = vadd.s32 %v622, 3
      %v626 = vadd.s32 %v622, 4
      %v627 = vadd.s32 %v622, 5
      %v628 = vadd.s32 %v622, 6
      %v629 = vadd.s32 %v622, 7
      %v630 = vadd.s32 %v622, 8
      %v631 = vadd.s32 %v622, 9
      %v632 = vlaneseq
      %v633 = vshrl.u32 %v632, 7
      %v634 = vadd.s32 %v633, 8
      %v635 = vadd.s32 %v633, 16
      %vm636 = vcmp.eq.s32.totalorder %v622, 0
      %vm637 = vcmp.eq.s32.totalorder %v623, 0
      %vm638 = vcmp.eq.s32.totalorder %v624, 0
      %vm639 = vcmp.eq.s32.totalorder %v625, 0
      %vm640 = vcmp.eq.s32.totalorder %v626, 0
      %vm641 = vcmp.eq.s32.totalorder %v627, 0
      %vm642 = vcmp.eq.s32.totalorder %v628, 0
      %vm643 = vcmp.eq.s32.totalorder %v629, 0
      %vm644 = vcmp.eq.s32.totalorder %v630, 0
      %vm645 = vcmp.eq.s32.totalorder %v631, 0
      %vm646 = vcmp.eq.s32.totalorder %v622, 17
      %vm647 = vcmp.eq.s32.totalorder %v623, 17
      %vm648 = vcmp.eq.s32.totalorder %v624, 17
      %vm649 = vcmp.eq.s32.totalorder %v625, 17
      %vm650 = vcmp.eq.s32.totalorder %v626, 17
      %vm651 = vcmp.eq.s32.totalorder %v627, 17
      %vm652 = vcmp.eq.s32.totalorder %v628, 17
      %vm653 = vcmp.eq.s32.totalorder %v629, 17
      %vm654 = vcmp.eq.s32.totalorder %v630, 17
      %vm655 = vcmp.eq.s32.totalorder %v631, 17
      %vm656 = vmor %vm636, %vm646
      %vm657 = vmor %vm637, %vm647
      %vm658 = vmor %vm638, %vm648
      %vm659 = vmor %vm639, %vm649
      %vm660 = vmor %vm640, %vm650
      %vm661 = vmor %vm641, %vm651
      %vm662 = vmor %vm642, %vm652
      %vm663 = vmor %vm643, %vm653
      %vm664 = vmor %vm644, %vm654
      %vm665 = vmor %vm645, %vm655
      %vm666 = vcmp.eq.s32.totalorder %v633, 0
      %vm667 = vcmp.eq.s32.totalorder %v634, 0
      %vm668 = vcmp.eq.s32.totalorder %v635, 0
      %vm669 = vmor %vm656, %vm666
      %vm670 = vmor %vm656, %vm667
      %vm671 = vmor %vm656, %vm668
      %vm672 = vmor %vm657, %vm666
      %vm673 = vmor %vm657, %vm667
      %vm674 = vmor %vm657, %vm668
      %vm675 = vmor %vm658, %vm666
      %vm676 = vmor %vm658, %vm667
      %vm677 = vmor %vm658, %vm668
      %vm678 = vmor %vm659, %vm666
      %vm679 = vmor %vm659, %vm667
      %vm680 = vmor %vm659, %vm668
      %vm681 = vmor %vm660, %vm666
      %vm682 = vmor %vm660, %vm667
      %vm683 = vmor %vm660, %vm668
      %vm684 = vmor %vm661, %vm666
      %vm685 = vmor %vm661, %vm667
      %vm686 = vmor %vm661, %vm668
      %vm687 = vmor %vm662, %vm666
      %vm688 = vmor %vm662, %vm667
      %vm689 = vmor %vm662, %vm668
      %vm690 = vmor %vm663, %vm666
      %vm691 = vmor %vm663, %vm667
      %vm692 = vmor %vm663, %vm668
      %vm693 = vmor %vm664, %vm666
      %vm694 = vmor %vm664, %vm667
      %vm695 = vmor %vm664, %vm668
      %vm696 = vmor %vm665, %vm666
      %vm697 = vmor %vm665, %vm667
      %vm698 = vmor %vm665, %vm668
      %vm699 = vcmp.ge.s32.totalorder %v633, 17
      %vm700 = vcmp.ge.s32.totalorder %v634, 17
      %vm701 = vcmp.ge.s32.totalorder %v635, 17
      %vm702 = vmor %vm669, %vm699
      %vm703 = vmor %vm670, %vm700
      %vm704 = vmor %vm671, %vm701
      %vm705 = vmor %vm672, %vm699
      %vm706 = vmor %vm673, %vm700
      %vm707 = vmor %vm674, %vm701
      %vm708 = vmor %vm675, %vm699
      %vm709 = vmor %vm676, %vm700
      %vm710 = vmor %vm677, %vm701
      %vm711 = vmor %vm678, %vm699
      %vm712 = vmor %vm679, %vm700
      %vm713 = vmor %vm680, %vm701
      %vm714 = vmor %vm681, %vm699
      %vm715 = vmor %vm682, %vm700
      %vm716 = vmor %vm683, %vm701
      %vm717 = vmor %vm684, %vm699
      %vm718 = vmor %vm685, %vm700
      %vm719 = vmor %vm686, %vm701
      %vm720 = vmor %vm687, %vm699
      %vm721 = vmor %vm688, %vm700
      %vm722 = vmor %vm689, %vm701
      %vm723 = vmor %vm690, %vm699
      %vm724 = vmor %vm691, %vm700
      %vm725 = vmor %vm692, %vm701
      %vm726 = vmor %vm693, %vm699
      %vm727 = vmor %vm694, %vm700
      %vm728 = vmor %vm695, %vm701
      %vm729 = vmor %vm696, %vm699
      %vm730 = vmor %vm697, %vm700
      %vm731 = vmor %vm698, %vm701
      %v732 = vsel %vm702, 1, 0
      %v733 = vsel %vm703, 1, 0
      %v734 = vsel %vm704, 1, 0
      %v735 = vsel %vm705, 1, 0
      %v736 = vsel %vm706, 1, 0
      %v737 = vsel %vm707, 1, 0
      %v738 = vsel %vm708, 1, 0
      %v739 = vsel %vm709, 1, 0
      %v740 = vsel %vm710, 1, 0
      %v741 = vsel %vm711, 1, 0
      %v742 = vsel %vm712, 1, 0
      %v743 = vsel %vm713, 1, 0
      %v744 = vsel %vm714, 1, 0
      %v745 = vsel %vm715, 1, 0
      %v746 = vsel %vm716, 1, 0
      %v747 = vsel %vm717, 1, 0
      %v748 = vsel %vm718, 1, 0
      %v749 = vsel %vm719, 1, 0
      %v750 = vsel %vm720, 1, 0
      %v751 = vsel %vm721, 1, 0
      %v752 = vsel %vm722, 1, 0
      %v753 = vsel %vm723, 1, 0
      %v754 = vsel %vm724, 1, 0
      %v755 = vsel %vm725, 1, 0
      %v756 = vsel %vm726, 1, 0
      %v757 = vsel %vm727, 1, 0
      %v758 = vsel %vm728, 1, 0
      %v759 = vsel %vm729, 1, 0
      %v760 = vsel %vm730, 1, 0
      %v761 = vsel %vm731, 1, 0
      %vm762 = vcmp.eq.s32.totalorder %v732, 1
      %vm763 = vcmp.eq.s32.totalorder %v733, 1
      %vm764 = vcmp.eq.s32.totalorder %v734, 1
      %vm765 = vcmp.eq.s32.totalorder %v735, 1
      %vm766 = vcmp.eq.s32.totalorder %v736, 1
      %vm767 = vcmp.eq.s32.totalorder %v737, 1
      %vm768 = vcmp.eq.s32.totalorder %v738, 1
      %vm769 = vcmp.eq.s32.totalorder %v739, 1
      %vm770 = vcmp.eq.s32.totalorder %v740, 1
      %vm771 = vcmp.eq.s32.totalorder %v741, 1
      %vm772 = vcmp.eq.s32.totalorder %v742, 1
      %vm773 = vcmp.eq.s32.totalorder %v743, 1
      %vm774 = vcmp.eq.s32.totalorder %v744, 1
      %vm775 = vcmp.eq.s32.totalorder %v745, 1
      %vm776 = vcmp.eq.s32.totalorder %v746, 1
      %vm777 = vcmp.eq.s32.totalorder %v747, 1
      %vm778 = vcmp.eq.s32.totalorder %v748, 1
      %vm779 = vcmp.eq.s32.totalorder %v749, 1
      %vm780 = vcmp.eq.s32.totalorder %v750, 1
      %vm781 = vcmp.eq.s32.totalorder %v751, 1
      %vm782 = vcmp.eq.s32.totalorder %v752, 1
      %vm783 = vcmp.eq.s32.totalorder %v753, 1
      %vm784 = vcmp.eq.s32.totalorder %v754, 1
      %vm785 = vcmp.eq.s32.totalorder %v755, 1
      %vm786 = vcmp.eq.s32.totalorder %v756, 1
      %vm787 = vcmp.eq.s32.totalorder %v757, 1
      %vm788 = vcmp.eq.s32.totalorder %v758, 1
      %vm789 = vcmp.eq.s32.totalorder %v759, 1
      %vm790 = vcmp.eq.s32.totalorder %v760, 1
      %vm791 = vcmp.eq.s32.totalorder %v761, 1
      %v792 = vsel %vm762, 0.0, %v592
      %v793 = vsel %vm763, 0.0, %v593
      %v794 = vsel %vm764, 0.0, %v594
      %v795 = vsel %vm765, 0.0, %v595
      %v796 = vsel %vm766, 0.0, %v596
      %v797 = vsel %vm767, 0.0, %v597
      %v798 = vsel %vm768, 0.0, %v598
      %v799 = vsel %vm769, 0.0, %v599
      %v800 = vsel %vm770, 0.0, %v600
      %v801 = vsel %vm771, 0.0, %v601
      %v802 = vsel %vm772, 0.0, %v602
      %v803 = vsel %vm773, 0.0, %v603
      %v804 = vsel %vm774, 0.0, %v604
      %v805 = vsel %vm775, 0.0, %v605
      %v806 = vsel %vm776, 0.0, %v606
      %v807 = vsel %vm777, 0.0, %v607
      %v808 = vsel %vm778, 0.0, %v608
      %v809 = vsel %vm779, 0.0, %v609
      %v810 = vsel %vm780, 0.0, %v610
      %v811 = vsel %vm781, 0.0, %v611
      %v812 = vsel %vm782, 0.0, %v612
      %v813 = vsel %vm783, 0.0, %v613
      %v814 = vsel %vm784, 0.0, %v614
      %v815 = vsel %vm785, 0.0, %v615
      %v816 = vsel %vm786, 0.0, %v616
      %v817 = vsel %vm787, 0.0, %v617
      %v818 = vsel %vm788, 0.0, %v618
      %v819 = vsel %vm789, 0.0, %v619
      %v820 = vsel %vm790, 0.0, %v620
      %v821 = vsel %vm791, 0.0, %v621
      %vm822 = vcmask 195584
      %823 = vst.msk [vmem:[#allocation2] sm:$0xff] %vm822, %v792
      %824 = vst.msk [vmem:[#allocation2 + $0x8] sm:$0xff] %vm822, %v793
      %825 = vst.msk [vmem:[#allocation2 + $0x10] sm:$0xff] %vm822, %v794
      %826 = vst.msk [vmem:[#allocation2 + $0x18] sm:$0xff] %vm822, %v795
      %827 = vst.msk [vmem:[#allocation2 + $0x20] sm:$0xff] %vm822, %v796
      %828 = vst.msk [vmem:[#allocation2 + $0x28] sm:$0xff] %vm822, %v797
      %829 = vst.msk [vmem:[#allocation2 + $0x30] sm:$0xff] %vm822, %v798
      %830 = vst.msk [vmem:[#allocation2 + $0x38] sm:$0xff] %vm822, %v799
      %831 = vst.msk [vmem:[#allocation2 + $0x40] sm:$0xff] %vm822, %v800
      %832 = vst.msk [vmem:[#allocation2 + $0x48] sm:$0xff] %vm822, %v801
      %833 = vst.msk [vmem:[#allocation2 + $0x50] sm:$0xff] %vm822, %v802
      %834 = vst.msk [vmem:[#allocation2 + $0x58] sm:$0xff] %vm822, %v803
      %835 = vst.msk [vmem:[#allocation2 + $0x60] sm:$0xff] %vm822, %v804
      %836 = vst.msk [vmem:[#allocation2 + $0x68] sm:$0xff] %vm822, %v805
      %837 = vst.msk [vmem:[#allocation2 + $0x70] sm:$0xff] %vm822, %v806
      %838 = vst.msk [vmem:[#allocation2 + $0x78] sm:$0xff] %vm822, %v807
      %839 = vst.msk [vmem:[#allocation2 + $0x80] sm:$0xff] %vm822, %v808
      %840 = vst.msk [vmem:[#allocation2 + $0x88] sm:$0xff] %vm822, %v809
      %841 = vst.msk [vmem:[#allocation2 + $0x90] sm:$0xff] %vm822, %v810
      %842 = vst.msk [vmem:[#allocation2 + $0x98] sm:$0xff] %vm822, %v811
      %843 = vst.msk [vmem:[#allocation2 + $0xa0] sm:$0xff] %vm822, %v812
      %844 = vst.msk [vmem:[#allocation2 + $0xa8] sm:$0xff] %vm822, %v813
      %845 = vst.msk [vmem:[#allocation2 + $0xb0] sm:$0xff] %vm822, %v814
      %846 = vst.msk [vmem:[#allocation2 + $0xb8] sm:$0xff] %vm822, %v815
      %847 = vst.msk [vmem:[#allocation2 + $0xc0] sm:$0xff] %vm822, %v816
      %848 = vst.msk [vmem:[#allocation2 + $0xc8] sm:$0xff] %vm822, %v817
      %849 = vst.msk [vmem:[#allocation2 + $0xd0] sm:$0xff] %vm822, %v818
      %850 = vst.msk [vmem:[#allocation2 + $0xd8] sm:$0xff] %vm822, %v819
      %851 = vst.msk [vmem:[#allocation2 + $0xe0] sm:$0xff] %vm822, %v820
      %852 = vst.msk [vmem:[#allocation2 + $0xe8] sm:$0xff] %vm822, %v821
      %v853 = vld [vmem:[%s3] sm:$0xff]
      %v854 = vld [vmem:[%s3 + $0x8] sm:$0x1]
      %v855 = vld [vmem:[#allocation2] sm:$0xff]
      %v856 = vld [vmem:[#allocation2 + $0x8] sm:$0xff]
      %v857 = vld [vmem:[#allocation2 + $0x18] sm:$0xff]
      %v858 = vld [vmem:[#allocation2 + $0x20] sm:$0xff]
      %v859 = vld [vmem:[#allocation2 + $0x30] sm:$0xff]
      %v860 = vld [vmem:[#allocation2 + $0x38] sm:$0xff]
      %v861 = vld [vmem:[#allocation2 + $0x48] sm:$0xff]
      %v862 = vld [vmem:[#allocation2 + $0x50] sm:$0xff]
      %v863 = vld [vmem:[#allocation2 + $0x60] sm:$0xff]
      %v864 = vld [vmem:[#allocation2 + $0x68] sm:$0xff]
      %v865 = vld [vmem:[#allocation2 + $0x78] sm:$0xff]
      %v866 = vld [vmem:[#allocation2 + $0x80] sm:$0xff]
      %v867 = vld [vmem:[#allocation2 + $0x90] sm:$0xff]
      %v868 = vld [vmem:[#allocation2 + $0x98] sm:$0xff]
      %v869 = vld [vmem:[#allocation2 + $0xa8] sm:$0xff]
      %v870 = vld [vmem:[#allocation2 + $0xb0] sm:$0xff]
      %v871 = vlaneseq
      %v872 = vshrl.u32 %v871, 7
      %v873 = vsub.s32 0, %v872
      %v874 = vrot.slane %v853, %v873
      %v875 = vmul.f32 %v855, %v874
      %v876 = vmul.f32 %v856, %v874
      %v877 = vmul.f32 %v857, %v874
      %v878 = vmul.f32 %v858, %v874
      %v879 = vmul.f32 %v859, %v874
      %v880 = vmul.f32 %v860, %v874
      %v881 = vmul.f32 %v861, %v874
      %v882 = vmul.f32 %v862, %v874
      %v883 = vmul.f32 %v863, %v874
      %v884 = vmul.f32 %v864, %v874
      %v885 = vmul.f32 %v865, %v874
      %v886 = vmul.f32 %v866, %v874
      %v887 = vmul.f32 %v867, %v874
      %v888 = vmul.f32 %v868, %v874
      %v889 = vmul.f32 %v869, %v874
      %v890 = vmul.f32 %v870, %v874
      %v891 = vadd.f32 %v875, 0.0
      %v892 = vadd.f32 %v876, 0.0
      %v893 = vadd.f32 %v877, 0.0
      %v894 = vadd.f32 %v878, 0.0
      %v895 = vadd.f32 %v879, 0.0
      %v896 = vadd.f32 %v880, 0.0
      %v897 = vadd.f32 %v881, 0.0
      %v898 = vadd.f32 %v882, 0.0
      %v899 = vadd.f32 %v883, 0.0
      %v900 = vadd.f32 %v884, 0.0
      %v901 = vadd.f32 %v885, 0.0
      %v902 = vadd.f32 %v886, 0.0
      %v903 = vadd.f32 %v887, 0.0
      %v904 = vadd.f32 %v888, 0.0
      %v905 = vadd.f32 %v889, 0.0
      %v906 = vadd.f32 %v890, 0.0
      %v907 = vld [vmem:[#allocation2 + $0x1] sm:$0xff]
      %v908 = vld [vmem:[#allocation2 + $0x9] sm:$0xff]
      %v909 = vld [vmem:[#allocation2 + $0x19] sm:$0xff]
      %v910 = vld [vmem:[#allocation2 + $0x21] sm:$0xff]
      %v911 = vld [vmem:[#allocation2 + $0x31] sm:$0xff]
      %v912 = vld [vmem:[#allocation2 + $0x39] sm:$0xff]
      %v913 = vld [vmem:[#allocation2 + $0x49] sm:$0xff]
      %v914 = vld [vmem:[#allocation2 + $0x51] sm:$0xff]
      %v915 = vld [vmem:[#allocation2 + $0x61] sm:$0xff]
      %v916 = vld [vmem:[#allocation2 + $0x69] sm:$0xff]
      %v917 = vld [vmem:[#allocation2 + $0x79] sm:$0xff]
      %v918 = vld [vmem:[#allocation2 + $0x81] sm:$0xff]
      %v919 = vld [vmem:[#allocation2 + $0x91] sm:$0xff]
      %v920 = vld [vmem:[#allocation2 + $0x99] sm:$0xff]
      %v921 = vld [vmem:[#allocation2 + $0xa9] sm:$0xff]
      %v922 = vld [vmem:[#allocation2 + $0xb1] sm:$0xff]
      %v923 = vlaneseq
      %v924 = vshrl.u32 %v923, 7
      %v925 = vsub.s32 1, %v924
      %v926 = vrot.slane %v853, %v925
      %v927 = vmul.f32 %v907, %v926
      %v928 = vmul.f32 %v908, %v926
      %v929 = vmul.f32 %v909, %v926
      %v930 = vmul.f32 %v910, %v926
      %v931 = vmul.f32 %v911, %v926
      %v932 = vmul.f32 %v912, %v926
      %v933 = vmul.f32 %v913, %v926
      %v934 = vmul.f32 %v914, %v926
      %v935 = vmul.f32 %v915, %v926
      %v936 = vmul.f32 %v916, %v926
      %v937 = vmul.f32 %v917, %v926
      %v938 = vmul.f32 %v918, %v926
      %v939 = vmul.f32 %v919, %v926
      %v940 = vmul.f32 %v920, %v926
      %v941 = vmul.f32 %v921, %v926
      %v942 = vmul.f32 %v922, %v926
      %v943 = vadd.f32 %v891, %v927
      %v944 = vadd.f32 %v892, %v928
      %v945 = vadd.f32 %v893, %v929
      %v946 = vadd.f32 %v894, %v930
      %v947 = vadd.f32 %v895, %v931
      %v948 = vadd.f32 %v896, %v932
      %v949 = vadd.f32 %v897, %v933
      %v950 = vadd.f32 %v898, %v934
      %v951 = vadd.f32 %v899, %v935
      %v952 = vadd.f32 %v900, %v936
      %v953 = vadd.f32 %v901, %v937
      %v954 = vadd.f32 %v902, %v938
      %v955 = vadd.f32 %v903, %v939
      %v956 = vadd.f32 %v904, %v940
      %v957 = vadd.f32 %v905, %v941
      %v958 = vadd.f32 %v906, %v942
      %v959 = vld [vmem:[#allocation2 + $0x2] sm:$0xff]
      %v960 = vld [vmem:[#allocation2 + $0xa] sm:$0xff]
      %v961 = vld [vmem:[#allocation2 + $0x1a] sm:$0xff]
      %v962 = vld [vmem:[#allocation2 + $0x22] sm:$0xff]
      %v963 = vld [vmem:[#allocation2 + $0x32] sm:$0xff]
      %v964 = vld [vmem:[#allocation2 + $0x3a] sm:$0xff]
      %v965 = vld [vmem:[#allocation2 + $0x4a] sm:$0xff]
      %v966 = vld [vmem:[#allocation2 + $0x52] sm:$0xff]
      %v967 = vld [vmem:[#allocation2 + $0x62] sm:$0xff]
      %v968 = vld [vmem:[#allocation2 + $0x6a] sm:$0xff]
      %v969 = vld [vmem:[#allocation2 + $0x7a] sm:$0xff]
      %v970 = vld [vmem:[#allocation2 + $0x82] sm:$0xff]
      %v971 = vld [vmem:[#allocation2 + $0x92] sm:$0xff]
      %v972 = vld [vmem:[#allocation2 + $0x9a] sm:$0xff]
      %v973 = vld [vmem:[#allocation2 + $0xaa] sm:$0xff]
      %v974 = vld [vmem:[#allocation2 + $0xb2] sm:$0xff]
      %v975 = vlaneseq
      %v976 = vshrl.u32 %v975, 7
      %v977 = vsub.s32 2, %v976
      %v978 = vrot.slane %v853, %v977
      %v979 = vmul.f32 %v959, %v978
      %v980 = vmul.f32 %v960, %v978
      %v981 = vmul.f32 %v961, %v978
      %v982 = vmul.f32 %v962, %v978
      %v983 = vmul.f32 %v963, %v978
      %v984 = vmul.f32 %v964, %v978
      %v985 = vmul.f32 %v965, %v978
      %v986 = vmul.f32 %v966, %v978
      %v987 = vmul.f32 %v967, %v978
      %v988 = vmul.f32 %v968, %v978
      %v989 = vmul.f32 %v969, %v978
      %v990 = vmul.f32 %v970, %v978
      %v991 = vmul.f32 %v971, %v978
      %v992 = vmul.f32 %v972, %v978
      %v993 = vmul.f32 %v973, %v978
      %v994 = vmul.f32 %v974, %v978
      %v995 = vadd.f32 %v943, %v979
      %v996 = vadd.f32 %v944, %v980
      %v997 = vadd.f32 %v945, %v981
      %v998 = vadd.f32 %v946, %v982
      %v999 = vadd.f32 %v947, %v983
      %v1000 = vadd.f32 %v948, %v984
      %v1001 = vadd.f32 %v949, %v985
      %v1002 = vadd.f32 %v950, %v986
      %v1003 = vadd.f32 %v951, %v987
      %v1004 = vadd.f32 %v952, %v988
      %v1005 = vadd.f32 %v953, %v989
      %v1006 = vadd.f32 %v954, %v990
      %v1007 = vadd.f32 %v955, %v991
      %v1008 = vadd.f32 %v956, %v992
      %v1009 = vadd.f32 %v957, %v993
      %v1010 = vadd.f32 %v958, %v994
      %s1011 = scalar_lea.vmem [#allocation2], 24
      %v1012 = vld [vmem:[%s1011] sm:$0xff]
      %v1013 = vld [vmem:[%s1011 + $0x8] sm:$0xff]
      %v1014 = vld [vmem:[%s1011 + $0x18] sm:$0xff]
      %v1015 = vld [vmem:[%s1011 + $0x20] sm:$0xff]
      %v1016 = vld [vmem:[%s1011 + $0x30] sm:$0xff]
      %v1017 = vld [vmem:[%s1011 + $0x38] sm:$0xff]
      %v1018 = vld [vmem:[%s1011 + $0x48] sm:$0xff]
      %v1019 = vld [vmem:[%s1011 + $0x50] sm:$0xff]
      %v1020 = vld [vmem:[%s1011 + $0x60] sm:$0xff]
      %v1021 = vld [vmem:[%s1011 + $0x68] sm:$0xff]
      %v1022 = vld [vmem:[%s1011 + $0x78] sm:$0xff]
      %v1023 = vld [vmem:[%s1011 + $0x80] sm:$0xff]
      %v1024 = vld [vmem:[%s1011 + $0x90] sm:$0xff]
      %v1025 = vld [vmem:[%s1011 + $0x98] sm:$0xff]
      %v1026 = vld [vmem:[%s1011 + $0xa8] sm:$0xff]
      %v1027 = vld [vmem:[%s1011 + $0xb0] sm:$0xff]
      %v1028 = vlaneseq
      %v1029 = vshrl.u32 %v1028, 7
      %v1030 = vsub.s32 3, %v1029
      %v1031 = vrot.slane %v853, %v1030
      %v1032 = vmul.f32 %v1012, %v1031
      %v1033 = vmul.f32 %v1013, %v1031
      %v1034 = vmul.f32 %v1014, %v1031
      %v1035 = vmul.f32 %v1015, %v1031
      %v1036 = vmul.f32 %v1016, %v1031
      %v1037 = vmul.f32 %v1017, %v1031
      %v1038 = vmul.f32 %v1018, %v1031
      %v1039 = vmul.f32 %v1019, %v1031
      %v1040 = vmul.f32 %v1020, %v1031
      %v1041 = vmul.f32 %v1021, %v1031
      %v1042 = vmul.f32 %v1022, %v1031
      %v1043 = vmul.f32 %v1023, %v1031
      %v1044 = vmul.f32 %v1024, %v1031
      %v1045 = vmul.f32 %v1025, %v1031
      %v1046 = vmul.f32 %v1026, %v1031
      %v1047 = vmul.f32 %v1027, %v1031
      %v1048 = vadd.f32 %v995, %v1032
      %v1049 = vadd.f32 %v996, %v1033
      %v1050 = vadd.f32 %v997, %v1034
      %v1051 = vadd.f32 %v998, %v1035
      %v1052 = vadd.f32 %v999, %v1036
      %v1053 = vadd.f32 %v1000, %v1037
      %v1054 = vadd.f32 %v1001, %v1038
      %v1055 = vadd.f32 %v1002, %v1039
      %v1056 = vadd.f32 %v1003, %v1040
      %v1057 = vadd.f32 %v1004, %v1041
      %v1058 = vadd.f32 %v1005, %v1042
      %v1059 = vadd.f32 %v1006, %v1043
      %v1060 = vadd.f32 %v1007, %v1044
      %v1061 = vadd.f32 %v1008, %v1045
      %v1062 = vadd.f32 %v1009, %v1046
      %v1063 = vadd.f32 %v1010, %v1047
      %v1064 = vld [vmem:[%s1011 + $0x1] sm:$0xff]
      %v1065 = vld [vmem:[%s1011 + $0x9] sm:$0xff]
      %v1066 = vld [vmem:[%s1011 + $0x19] sm:$0xff]
      %v1067 = vld [vmem:[%s1011 + $0x21] sm:$0xff]
      %v1068 = vld [vmem:[%s1011 + $0x31] sm:$0xff]
      %v1069 = vld [vmem:[%s1011 + $0x39] sm:$0xff]
      %v1070 = vld [vmem:[%s1011 + $0x49] sm:$0xff]
      %v1071 = vld [vmem:[%s1011 + $0x51] sm:$0xff]
      %v1072 = vld [vmem:[%s1011 + $0x61] sm:$0xff]
      %v1073 = vld [vmem:[%s1011 + $0x69] sm:$0xff]
      %v1074 = vld [vmem:[%s1011 + $0x79] sm:$0xff]
      %v1075 = vld [vmem:[%s1011 + $0x81] sm:$0xff]
      %v1076 = vld [vmem:[%s1011 + $0x91] sm:$0xff]
      %v1077 = vld [vmem:[%s1011 + $0x99] sm:$0xff]
      %v1078 = vld [vmem:[%s1011 + $0xa9] sm:$0xff]
      %v1079 = vld [vmem:[%s1011 + $0xb1] sm:$0xff]
      %v1080 = vlaneseq
      %v1081 = vshrl.u32 %v1080, 7
      %v1082 = vsub.s32 4, %v1081
      %v1083 = vrot.slane %v853, %v1082
      %v1084 = vmul.f32 %v1064, %v1083
      %v1085 = vmul.f32 %v1065, %v1083
      %v1086 = vmul.f32 %v1066, %v1083
      %v1087 = vmul.f32 %v1067, %v1083
      %v1088 = vmul.f32 %v1068, %v1083
      %v1089 = vmul.f32 %v1069, %v1083
      %v1090 = vmul.f32 %v1070, %v1083
      %v1091 = vmul.f32 %v1071, %v1083
      %v1092 = vmul.f32 %v1072, %v1083
      %v1093 = vmul.f32 %v1073, %v1083
      %v1094 = vmul.f32 %v1074, %v1083
      %v1095 = vmul.f32 %v1075, %v1083
      %v1096 = vmul.f32 %v1076, %v1083
      %v1097 = vmul.f32 %v1077, %v1083
      %v1098 = vmul.f32 %v1078, %v1083
      %v1099 = vmul.f32 %v1079, %v1083
      %v1100 = vadd.f32 %v1048, %v1084
      %v1101 = vadd.f32 %v1049, %v1085
      %v1102 = vadd.f32 %v1050, %v1086
      %v1103 = vadd.f32 %v1051, %v1087
      %v1104 = vadd.f32 %v1052, %v1088
      %v1105 = vadd.f32 %v1053, %v1089
      %v1106 = vadd.f32 %v1054, %v1090
      %v1107 = vadd.f32 %v1055, %v1091
      %v1108 = vadd.f32 %v1056, %v1092
      %v1109 = vadd.f32 %v1057, %v1093
      %v1110 = vadd.f32 %v1058, %v1094
      %v1111 = vadd.f32 %v1059, %v1095
      %v1112 = vadd.f32 %v1060, %v1096
      %v1113 = vadd.f32 %v1061, %v1097
      %v1114 = vadd.f32 %v1062, %v1098
      %v1115 = vadd.f32 %v1063, %v1099
      %v1116 = vld [vmem:[%s1011 + $0x2] sm:$0xff]
      %v1117 = vld [vmem:[%s1011 + $0xa] sm:$0xff]
      %v1118 = vld [vmem:[%s1011 + $0x1a] sm:$0xff]
      %v1119 = vld [vmem:[%s1011 + $0x22] sm:$0xff]
      %v1120 = vld [vmem:[%s1011 + $0x32] sm:$0xff]
      %v1121 = vld [vmem:[%s1011 + $0x3a] sm:$0xff]
      %v1122 = vld [vmem:[%s1011 + $0x4a] sm:$0xff]
      %v1123 = vld [vmem:[%s1011 + $0x52] sm:$0xff]
      %v1124 = vld [vmem:[%s1011 + $0x62] sm:$0xff]
      %v1125 = vld [vmem:[%s1011 + $0x6a] sm:$0xff]
      %v1126 = vld [vmem:[%s1011 + $0x7a] sm:$0xff]
      %v1127 = vld [vmem:[%s1011 + $0x82] sm:$0xff]
      %v1128 = vld [vmem:[%s1011 + $0x92] sm:$0xff]
      %v1129 = vld [vmem:[%s1011 + $0x9a] sm:$0xff]
      %v1130 = vld [vmem:[%s1011 + $0xaa] sm:$0xff]
      %v1131 = vld [vmem:[%s1011 + $0xb2] sm:$0xff]
      %v1132 = vlaneseq
      %v1133 = vshrl.u32 %v1132, 7
      %v1134 = vsub.s32 5, %v1133
      %v1135 = vrot.slane %v853, %v1134
      %v1136 = vmul.f32 %v1116, %v1135
      %v1137 = vmul.f32 %v1117, %v1135
      %v1138 = vmul.f32 %v1118, %v1135
      %v1139 = vmul.f32 %v1119, %v1135
      %v1140 = vmul.f32 %v1120, %v1135
      %v1141 = vmul.f32 %v1121, %v1135
      %v1142 = vmul.f32 %v1122, %v1135
      %v1143 = vmul.f32 %v1123, %v1135
      %v1144 = vmul.f32 %v1124, %v1135
      %v1145 = vmul.f32 %v1125, %v1135
      %v1146 = vmul.f32 %v1126, %v1135
      %v1147 = vmul.f32 %v1127, %v1135
      %v1148 = vmul.f32 %v1128, %v1135
      %v1149 = vmul.f32 %v1129, %v1135
      %v1150 = vmul.f32 %v1130, %v1135
      %v1151 = vmul.f32 %v1131, %v1135
      %v1152 = vadd.f32 %v1100, %v1136
      %v1153 = vadd.f32 %v1101, %v1137
      %v1154 = vadd.f32 %v1102, %v1138
      %v1155 = vadd.f32 %v1103, %v1139
      %v1156 = vadd.f32 %v1104, %v1140
      %v1157 = vadd.f32 %v1105, %v1141
      %v1158 = vadd.f32 %v1106, %v1142
      %v1159 = vadd.f32 %v1107, %v1143
      %v1160 = vadd.f32 %v1108, %v1144
      %v1161 = vadd.f32 %v1109, %v1145
      %v1162 = vadd.f32 %v1110, %v1146
      %v1163 = vadd.f32 %v1111, %v1147
      %v1164 = vadd.f32 %v1112, %v1148
      %v1165 = vadd.f32 %v1113, %v1149
      %v1166 = vadd.f32 %v1114, %v1150
      %v1167 = vadd.f32 %v1115, %v1151
      %s1168 = scalar_lea.vmem [#allocation2], 48
      %v1169 = vld [vmem:[%s1168] sm:$0xff]
      %v1170 = vld [vmem:[%s1168 + $0x8] sm:$0xff]
      %v1171 = vld [vmem:[%s1168 + $0x18] sm:$0xff]
      %v1172 = vld [vmem:[%s1168 + $0x20] sm:$0xff]
      %v1173 = vld [vmem:[%s1168 + $0x30] sm:$0xff]
      %v1174 = vld [vmem:[%s1168 + $0x38] sm:$0xff]
      %v1175 = vld [vmem:[%s1168 + $0x48] sm:$0xff]
      %v1176 = vld [vmem:[%s1168 + $0x50] sm:$0xff]
      %v1177 = vld [vmem:[%s1168 + $0x60] sm:$0xff]
      %v1178 = vld [vmem:[%s1168 + $0x68] sm:$0xff]
      %v1179 = vld [vmem:[%s1168 + $0x78] sm:$0xff]
      %v1180 = vld [vmem:[%s1168 + $0x80] sm:$0xff]
      %v1181 = vld [vmem:[%s1168 + $0x90] sm:$0xff]
      %v1182 = vld [vmem:[%s1168 + $0x98] sm:$0xff]
      %v1183 = vld [vmem:[%s1168 + $0xa8] sm:$0xff]
      %v1184 = vld [vmem:[%s1168 + $0xb0] sm:$0xff]
      %v1185 = vlaneseq
      %v1186 = vshrl.u32 %v1185, 7
      %v1187 = vsub.s32 6, %v1186
      %v1188 = vrot.slane %v853, %v1187
      %v1189 = vmul.f32 %v1169, %v1188
      %v1190 = vmul.f32 %v1170, %v1188
      %v1191 = vmul.f32 %v1171, %v1188
      %v1192 = vmul.f32 %v1172, %v1188
      %v1193 = vmul.f32 %v1173, %v1188
      %v1194 = vmul.f32 %v1174, %v1188
      %v1195 = vmul.f32 %v1175, %v1188
      %v1196 = vmul.f32 %v1176, %v1188
      %v1197 = vmul.f32 %v1177, %v1188
      %v1198 = vmul.f32 %v1178, %v1188
      %v1199 = vmul.f32 %v1179, %v1188
      %v1200 = vmul.f32 %v1180, %v1188
      %v1201 = vmul.f32 %v1181, %v1188
      %v1202 = vmul.f32 %v1182, %v1188
      %v1203 = vmul.f32 %v1183, %v1188
      %v1204 = vmul.f32 %v1184, %v1188
      %v1205 = vadd.f32 %v1152, %v1189
      %v1206 = vadd.f32 %v1153, %v1190
      %v1207 = vadd.f32 %v1154, %v1191
      %v1208 = vadd.f32 %v1155, %v1192
      %v1209 = vadd.f32 %v1156, %v1193
      %v1210 = vadd.f32 %v1157, %v1194
      %v1211 = vadd.f32 %v1158, %v1195
      %v1212 = vadd.f32 %v1159, %v1196
      %v1213 = vadd.f32 %v1160, %v1197
      %v1214 = vadd.f32 %v1161, %v1198
      %v1215 = vadd.f32 %v1162, %v1199
      %v1216 = vadd.f32 %v1163, %v1200
      %v1217 = vadd.f32 %v1164, %v1201
      %v1218 = vadd.f32 %v1165, %v1202
      %v1219 = vadd.f32 %v1166, %v1203
      %v1220 = vadd.f32 %v1167, %v1204
      %v1221 = vld [vmem:[%s1168 + $0x1] sm:$0xff]
      %v1222 = vld [vmem:[%s1168 + $0x9] sm:$0xff]
      %v1223 = vld [vmem:[%s1168 + $0x19] sm:$0xff]
      %v1224 = vld [vmem:[%s1168 + $0x21] sm:$0xff]
      %v1225 = vld [vmem:[%s1168 + $0x31] sm:$0xff]
      %v1226 = vld [vmem:[%s1168 + $0x39] sm:$0xff]
      %v1227 = vld [vmem:[%s1168 + $0x49] sm:$0xff]
      %v1228 = vld [vmem:[%s1168 + $0x51] sm:$0xff]
      %v1229 = vld [vmem:[%s1168 + $0x61] sm:$0xff]
      %v1230 = vld [vmem:[%s1168 + $0x69] sm:$0xff]
      %v1231 = vld [vmem:[%s1168 + $0x79] sm:$0xff]
      %v1232 = vld [vmem:[%s1168 + $0x81] sm:$0xff]
      %v1233 = vld [vmem:[%s1168 + $0x91] sm:$0xff]
      %v1234 = vld [vmem:[%s1168 + $0x99] sm:$0xff]
      %v1235 = vld [vmem:[%s1168 + $0xa9] sm:$0xff]
      %v1236 = vld [vmem:[%s1168 + $0xb1] sm:$0xff]
      %v1237 = vlaneseq
      %v1238 = vshrl.u32 %v1237, 7
      %v1239 = vsub.s32 7, %v1238
      %v1240 = vrot.slane %v853, %v1239
      %v1241 = vmul.f32 %v1221, %v1240
      %v1242 = vmul.f32 %v1222, %v1240
      %v1243 = vmul.f32 %v1223, %v1240
      %v1244 = vmul.f32 %v1224, %v1240
      %v1245 = vmul.f32 %v1225, %v1240
      %v1246 = vmul.f32 %v1226, %v1240
      %v1247 = vmul.f32 %v1227, %v1240
      %v1248 = vmul.f32 %v1228, %v1240
      %v1249 = vmul.f32 %v1229, %v1240
      %v1250 = vmul.f32 %v1230, %v1240
      %v1251 = vmul.f32 %v1231, %v1240
      %v1252 = vmul.f32 %v1232, %v1240
      %v1253 = vmul.f32 %v1233, %v1240
      %v1254 = vmul.f32 %v1234, %v1240
      %v1255 = vmul.f32 %v1235, %v1240
      %v1256 = vmul.f32 %v1236, %v1240
      %v1257 = vadd.f32 %v1205, %v1241
      %v1258 = vadd.f32 %v1206, %v1242
      %v1259 = vadd.f32 %v1207, %v1243
      %v1260 = vadd.f32 %v1208, %v1244
      %v1261 = vadd.f32 %v1209, %v1245
      %v1262 = vadd.f32 %v1210, %v1246
      %v1263 = vadd.f32 %v1211, %v1247
      %v1264 = vadd.f32 %v1212, %v1248
      %v1265 = vadd.f32 %v1213, %v1249
      %v1266 = vadd.f32 %v1214, %v1250
      %v1267 = vadd.f32 %v1215, %v1251
      %v1268 = vadd.f32 %v1216, %v1252
      %v1269 = vadd.f32 %v1217, %v1253
      %v1270 = vadd.f32 %v1218, %v1254
      %v1271 = vadd.f32 %v1219, %v1255
      %v1272 = vadd.f32 %v1220, %v1256
      %v1273 = vld [vmem:[%s1168 + $0x2] sm:$0xff]
      %v1274 = vld [vmem:[%s1168 + $0xa] sm:$0xff]
      %v1275 = vld [vmem:[%s1168 + $0x1a] sm:$0xff]
      %v1276 = vld [vmem:[%s1168 + $0x22] sm:$0xff]
      %v1277 = vld [vmem:[%s1168 + $0x32] sm:$0xff]
      %v1278 = vld [vmem:[%s1168 + $0x3a] sm:$0xff]
      %v1279 = vld [vmem:[%s1168 + $0x4a] sm:$0xff]
      %v1280 = vld [vmem:[%s1168 + $0x52] sm:$0xff]
      %v1281 = vld [vmem:[%s1168 + $0x62] sm:$0xff]
      %v1282 = vld [vmem:[%s1168 + $0x6a] sm:$0xff]
      %v1283 = vld [vmem:[%s1168 + $0x7a] sm:$0xff]
      %v1284 = vld [vmem:[%s1168 + $0x82] sm:$0xff]
      %v1285 = vld [vmem:[%s1168 + $0x92] sm:$0xff]
      %v1286 = vld [vmem:[%s1168 + $0x9a] sm:$0xff]
      %v1287 = vld [vmem:[%s1168 + $0xaa] sm:$0xff]
      %v1288 = vld [vmem:[%s1168 + $0xb2] sm:$0xff]
      %v1289 = vlaneseq
      %v1290 = vshrl.u32 %v1289, 7
      %v1291 = vsub.s32 0, %v1290
      %v1292 = vrot.slane %v854, %v1291
      %v1293 = vmul.f32 %v1273, %v1292
      %v1294 = vmul.f32 %v1274, %v1292
      %v1295 = vmul.f32 %v1275, %v1292
      %v1296 = vmul.f32 %v1276, %v1292
      %v1297 = vmul.f32 %v1277, %v1292
      %v1298 = vmul.f32 %v1278, %v1292
      %v1299 = vmul.f32 %v1279, %v1292
      %v1300 = vmul.f32 %v1280, %v1292
      %v1301 = vmul.f32 %v1281, %v1292
      %v1302 = vmul.f32 %v1282, %v1292
      %v1303 = vmul.f32 %v1283, %v1292
      %v1304 = vmul.f32 %v1284, %v1292
      %v1305 = vmul.f32 %v1285, %v1292
      %v1306 = vmul.f32 %v1286, %v1292
      %v1307 = vmul.f32 %v1287, %v1292
      %v1308 = vmul.f32 %v1288, %v1292
      %v1309 = vadd.f32 %v1257, %v1293
      %v1310 = vadd.f32 %v1258, %v1294
      %v1311 = vadd.f32 %v1259, %v1295
      %v1312 = vadd.f32 %v1260, %v1296
      %v1313 = vadd.f32 %v1261, %v1297
      %v1314 = vadd.f32 %v1262, %v1298
      %v1315 = vadd.f32 %v1263, %v1299
      %v1316 = vadd.f32 %v1264, %v1300
      %v1317 = vadd.f32 %v1265, %v1301
      %v1318 = vadd.f32 %v1266, %v1302
      %v1319 = vadd.f32 %v1267, %v1303
      %v1320 = vadd.f32 %v1268, %v1304
      %v1321 = vadd.f32 %v1269, %v1305
      %v1322 = vadd.f32 %v1270, %v1306
      %v1323 = vadd.f32 %v1271, %v1307
      %v1324 = vadd.f32 %v1272, %v1308
      %v1325 = vld [vmem:[%s4] sm:$0x1]
      %v1327 = vlaneseq
      %v1328 = vshrl.u32 %v1327, 7
      %v1329 = vsub.s32 0, %v1328
      %v1330 = vrot.slane %v1325, %v1329
      %v1332 = vadd.f32 %v1309, %v1330
      %v1333 = vadd.f32 %v1310, %v1330
      %v1334 = vadd.f32 %v1311, %v1330
      %v1335 = vadd.f32 %v1312, %v1330
      %v1336 = vadd.f32 %v1313, %v1330
      %v1337 = vadd.f32 %v1314, %v1330
      %v1338 = vadd.f32 %v1315, %v1330
      %v1339 = vadd.f32 %v1316, %v1330
      %v1340 = vadd.f32 %v1317, %v1330
      %v1341 = vadd.f32 %v1318, %v1330
      %v1342 = vadd.f32 %v1319, %v1330
      %v1343 = vadd.f32 %v1320, %v1330
      %v1344 = vadd.f32 %v1321, %v1330
      %v1345 = vadd.f32 %v1322, %v1330
      %v1346 = vadd.f32 %v1323, %v1330
      %v1347 = vadd.f32 %v1324, %v1330
      %v1348 = vmax.f32 %v1332, 0.0
      %v1349 = vmax.f32 %v1333, 0.0
      %v1350 = vmax.f32 %v1334, 0.0
      %v1351 = vmax.f32 %v1335, 0.0
      %v1352 = vmax.f32 %v1336, 0.0
      %v1353 = vmax.f32 %v1337, 0.0
      %v1354 = vmax.f32 %v1338, 0.0
      %v1355 = vmax.f32 %v1339, 0.0
      %v1356 = vmax.f32 %v1340, 0.0
      %v1357 = vmax.f32 %v1341, 0.0
      %v1358 = vmax.f32 %v1342, 0.0
      %v1359 = vmax.f32 %v1343, 0.0
      %v1360 = vmax.f32 %v1344, 0.0
      %v1361 = vmax.f32 %v1345, 0.0
      %v1362 = vmax.f32 %v1346, 0.0
      %v1363 = vmax.f32 %v1347, 0.0
      %v1364 = vmin.f32 %v1348, 6.0
      %v1365 = vmin.f32 %v1349, 6.0
      %v1366 = vmin.f32 %v1350, 6.0
      %v1367 = vmin.f32 %v1351, 6.0
      %v1368 = vmin.f32 %v1352, 6.0
      %v1369 = vmin.f32 %v1353, 6.0
      %v1370 = vmin.f32 %v1354, 6.0
      %v1371 = vmin.f32 %v1355, 6.0
      %v1372 = vmin.f32 %v1356, 6.0
      %v1373 = vmin.f32 %v1357, 6.0
      %v1374 = vmin.f32 %v1358, 6.0
      %v1375 = vmin.f32 %v1359, 6.0
      %v1376 = vmin.f32 %v1360, 6.0
      %v1377 = vmin.f32 %v1361, 6.0
      %v1378 = vmin.f32 %v1362, 6.0
      %v1379 = vmin.f32 %v1363, 6.0
      %v1380 = vpack.c.bf16 %v1365, %v1364
      %v1381 = vpack.c.bf16 %v1367, %v1366
      %v1382 = vpack.c.bf16 %v1369, %v1368
      %v1383 = vpack.c.bf16 %v1371, %v1370
      %v1384 = vpack.c.bf16 %v1373, %v1372
      %v1385 = vpack.c.bf16 %v1375, %v1374
      %v1386 = vpack.c.bf16 %v1377, %v1376
      %v1387 = vpack.c.bf16 %v1379, %v1378
      %v1388 = vld [vmem:[%s5] sm:$0xf]
      %v1389 = vld [vmem:[%s5 + $0x4] sm:$0xf]
      %v1390 = vld [vmem:[%s5 + $0x8] sm:$0xf]
      %v1391 = vld [vmem:[%s6] sm:$0x1]
      %v1393 = vlaneseq
      %v1394 = vshrl.u32 %v1393, 7
      %v1395 = vsub.s32 0, %v1394
      %v1396 = vrot.slane %v1391, %v1395
      %v1401 = vunpack.c.l.b16 %v1388
      %v1402 = vunpack.c.l.b16 %v1389
      %v1403 = vunpack.c.l.b16 %v1390
      %v1404 = vpack.c.b16 %v1402, %v1401
      %v1405 = vpack.c.b16 %v1403, %v1403
      %v1408 = vsel %vm822, %v1380, 0
      %v1411 = vsel %vm822, %v1381, 0
      %v1414 = vsel %vm822, %v1382, 0
      %v1417 = vsel %vm822, %v1383, 0
      %v1420 = vsel %vm822, %v1384, 0
      %v1423 = vsel %vm822, %v1385, 0
      %v1426 = vsel %vm822, %v1386, 0
      %v1429 = vsel %vm822, %v1387, 0
      %v1432 = vsel %vm405, %v1405, 0
      %1434 = vmatprep.subr.bf16.mxu0 0
      %1435 = vmatpush1.bf16.msra.mxu0 0
      %1436 = vmatprep.subr.bf16.mxu0 0
      %1437 = vmatpush1.bf16.msra.mxu0 0
      %1438 = vmatprep.subr.bf16.mxu0 0
      %1439 = vmatpush1.bf16.msra.mxu0 0
      %1440 = vmatprep.subr.bf16.mxu0 0
      %1441 = vmatpush1.bf16.msra.mxu0 0
      %1442 = vmatprep.subr.bf16.mxu0 0
      %1443 = vmatpush1.bf16.msra.mxu0 0
      %1444 = vmatprep.subr.bf16.mxu0 0
      %1445 = vmatpush1.bf16.msra.mxu0 0
      %1446 = vmatprep.subr.bf16.mxu0 0
      %1447 = vmatpush1.bf16.msra.mxu0 %v1432
      %1448 = vmatprep.subr.bf16.mxu0 0
      %1449 = vmatpush1.bf16.msra.mxu0 %v1404
      %1450 = vmatprep.subr.bf16.mxu0 0
      %1451 = vmatpush2.bf16.msra.mxu0 0
      %1452 = vmatprep.subr.bf16.mxu0 0
      %1453 = vmatpush2.bf16.msra.mxu0 0
      %1454 = vmatprep.subr.bf16.mxu0 0
      %1455 = vmatpush2.bf16.msra.mxu0 0
      %1456 = vmatprep.subr.bf16.mxu0 0
      %1457 = vmatpush2.bf16.msra.mxu0 0
      %1458 = vmatprep.subr.bf16.mxu0 0
      %1459 = vmatpush2.bf16.msra.mxu0 0
      %1460 = vmatprep.subr.bf16.mxu0 0
      %1461 = vmatpush2.bf16.msra.mxu0 0
      %1462 = vmatprep.subr.bf16.mxu0 0
      %1463 = vmatpush2.bf16.msra.mxu0 0
      %1464 = vmatprep.subr.bf16.mxu0 0
      %1465 = vmatpush2.bf16.msra.mxu0 0
      %1466 = vmatprep.mubr.bf16.mxu0 0
      %1467 = vmatmul.mubr.bf16.gmra.mxu0 %v1408
      %v1468 = vpop.f32.mrf.mxu0
      %v1469 = vadd.f32 %v1396, %v1468
      %v1470 = vpop.f32.mrf.mxu0
      %v1471 = vpop.f32.mrf.mxu0
      %v1472 = vadd.f32 %v1396, %v1471
      %v1473 = vpop.f32.mrf.mxu0
      %1474 = vmatprep.mubr.bf16.mxu0 0
      %1475 = vmatmul.mubr.bf16.gmra.mxu0 %v1411
      %v1476 = vpop.f32.mrf.mxu0
      %v1477 = vadd.f32 %v1396, %v1476
      %v1478 = vpop.f32.mrf.mxu0
      %v1479 = vpop.f32.mrf.mxu0
      %v1480 = vadd.f32 %v1396, %v1479
      %v1481 = vpop.f32.mrf.mxu0
      %1482 = vmatprep.mubr.bf16.mxu0 0
      %1483 = vmatmul.mubr.bf16.gmra.mxu0 %v1414
      %v1484 = vpop.f32.mrf.mxu0
      %v1485 = vadd.f32 %v1396, %v1484
      %v1486 = vpop.f32.mrf.mxu0
      %v1487 = vpop.f32.mrf.mxu0
      %v1488 = vadd.f32 %v1396, %v1487
      %v1489 = vpop.f32.mrf.mxu0
      %1490 = vmatprep.mubr.bf16.mxu0 0
      %1491 = vmatmul.mubr.bf16.gmra.mxu0 %v1417
      %v1492 = vpop.f32.mrf.mxu0
      %v1493 = vadd.f32 %v1396, %v1492
      %v1494 = vpop.f32.mrf.mxu0
      %v1495 = vpop.f32.mrf.mxu0
      %v1496 = vadd.f32 %v1396, %v1495
      %v1497 = vpop.f32.mrf.mxu0
      %1498 = vmatprep.mubr.bf16.mxu0 0
      %1499 = vmatmul.mubr.bf16.gmra.mxu0 %v1420
      %v1500 = vpop.f32.mrf.mxu0
      %v1501 = vadd.f32 %v1396, %v1500
      %v1502 = vpop.f32.mrf.mxu0
      %v1503 = vpop.f32.mrf.mxu0
      %v1504 = vadd.f32 %v1396, %v1503
      %v1505 = vpop.f32.mrf.mxu0
      %1506 = vmatprep.mubr.bf16.mxu0 0
      %1507 = vmatmul.mubr.bf16.gmra.mxu0 %v1423
      %v1508 = vpop.f32.mrf.mxu0
      %v1509 = vadd.f32 %v1396, %v1508
      %v1510 = vpop.f32.mrf.mxu0
      %v1511 = vpop.f32.mrf.mxu0
      %v1512 = vadd.f32 %v1396, %v1511
      %v1513 = vpop.f32.mrf.mxu0
      %1514 = vmatprep.mubr.bf16.mxu0 0
      %1515 = vmatmul.mubr.bf16.gmra.mxu0 %v1426
      %v1516 = vpop.f32.mrf.mxu0
      %v1517 = vadd.f32 %v1396, %v1516
      %v1518 = vpop.f32.mrf.mxu0
      %v1519 = vpop.f32.mrf.mxu0
      %v1520 = vadd.f32 %v1396, %v1519
      %v1521 = vpop.f32.mrf.mxu0
      %1522 = vmatprep.mubr.bf16.mxu0 0
      %1523 = vmatmul.mubr.bf16.gmra.mxu0 %v1429
      %v1524 = vpop.f32.mrf.mxu0
      %v1525 = vadd.f32 %v1396, %v1524
      %v1526 = vpop.f32.mrf.mxu0
      %v1527 = vpop.f32.mrf.mxu0
      %v1528 = vadd.f32 %v1396, %v1527
      %v1529 = vpop.f32.mrf.mxu0
      %1530 = vdwg.mxu0
      %s1531 = sadd.s32 %s303, 1
      %s1532 = smul.u32 %s1531, 24
      %s1533 = scalar_lea.vmem %s291, %s1532
      %v1534 = vld [vmem:[%s1533 + $0x1] sm:$0xff]
      %v1535 = vld [vmem:[%s1533 + $0x9] sm:$0xff]
      %v1536 = vld [vmem:[%s1533 + $0x19] sm:$0xff]
      %v1537 = vld [vmem:[%s1533 + $0x21] sm:$0xff]
      %v1538 = vld [vmem:[%s1533 + $0x31] sm:$0xff]
      %v1539 = vld [vmem:[%s1533 + $0x39] sm:$0xff]
      %v1540 = vld [vmem:[%s1533 + $0x49] sm:$0xff]
      %v1541 = vld [vmem:[%s1533 + $0x51] sm:$0xff]
      %v1542 = vld [vmem:[%s1533 + $0x61] sm:$0xff]
      %v1543 = vld [vmem:[%s1533 + $0x69] sm:$0xff]
      %v1544 = vld [vmem:[%s1533 + $0x79] sm:$0xff]
      %v1545 = vld [vmem:[%s1533 + $0x81] sm:$0xff]
      %v1546 = vld [vmem:[%s1533 + $0x91] sm:$0xff]
      %v1547 = vld [vmem:[%s1533 + $0x99] sm:$0xff]
      %v1548 = vld [vmem:[%s1533 + $0xa9] sm:$0xff]
      %v1549 = vld [vmem:[%s1533 + $0xb1] sm:$0xff]
      %v1550 = vadd.f32 %v1469, %v1534
      %v1551 = vadd.f32 %v1472, %v1535
      %v1552 = vadd.f32 %v1477, %v1536
      %v1553 = vadd.f32 %v1480, %v1537
      %v1554 = vadd.f32 %v1485, %v1538
      %v1555 = vadd.f32 %v1488, %v1539
      %v1556 = vadd.f32 %v1493, %v1540
      %v1557 = vadd.f32 %v1496, %v1541
      %v1558 = vadd.f32 %v1501, %v1542
      %v1559 = vadd.f32 %v1504, %v1543
      %v1560 = vadd.f32 %v1509, %v1544
      %v1561 = vadd.f32 %v1512, %v1545
      %v1562 = vadd.f32 %v1517, %v1546
      %v1563 = vadd.f32 %v1520, %v1547
      %v1564 = vadd.f32 %v1525, %v1548
      %v1565 = vadd.f32 %v1528, %v1549
      %1566 = vst.msk [vmem:[%s300] sm:$0xff] %vm359, %v1550
      %1567 = vst.msk [vmem:[%s300 + $0x8] sm:$0xff] %vm359, %v1551
      %1568 = vst.msk [vmem:[%s300 + $0x10] sm:$0xff] %vm359, %v1552
      %1569 = vst.msk [vmem:[%s300 + $0x18] sm:$0xff] %vm359, %v1553
      %1570 = vst.msk [vmem:[%s300 + $0x20] sm:$0xff] %vm359, %v1554
      %1571 = vst.msk [vmem:[%s300 + $0x28] sm:$0xff] %vm359, %v1555
      %1572 = vst.msk [vmem:[%s300 + $0x30] sm:$0xff] %vm359, %v1556
      %1573 = vst.msk [vmem:[%s300 + $0x38] sm:$0xff] %vm359, %v1557
      %1574 = vst.msk [vmem:[%s300 + $0x40] sm:$0xff] %vm359, %v1558
      %1575 = vst.msk [vmem:[%s300 + $0x48] sm:$0xff] %vm359, %v1559
      %1576 = vst.msk [vmem:[%s300 + $0x50] sm:$0xff] %vm359, %v1560
      %1577 = vst.msk [vmem:[%s300 + $0x58] sm:$0xff] %vm359, %v1561
      %1578 = vst.msk [vmem:[%s300 + $0x60] sm:$0xff] %vm359, %v1562
      %1579 = vst.msk [vmem:[%s300 + $0x68] sm:$0xff] %vm359, %v1563
      %1580 = vst.msk [vmem:[%s300 + $0x70] sm:$0xff] %vm359, %v1564
      %1581 = vst.msk [vmem:[%s300 + $0x78] sm:$0xff] %vm359, %v1565
      %s1582 = smul.u32 16, %s23
      %p1583 = scmp.lt.s32.totalorder %s22, 1
      %s1584 = scalar_select %p1583, %s22, 1
      %p1585 = scmp.lt.s32.totalorder %s1582, 31
      %s1586 = scalar_select %p1585, %s1582, 31
      %s1587 = smul.addr %s1584, 32
      %s1588 = sadd.s32 %s1586, %s1587
      %s1589 = smul.addr %s1588, 8
      %s1590 = scalar_lea.vmem %s7, %s1589
      // Predicated region
      $region49: #{tpu_custom_call.1} parent=47 // pred_check
        %p1591 = pneg %p202
      $region50: #{tpu_custom_call.1} parent=47 // pred_check_branch
        %1593 = sbr.rel (%p1591) target = $region52
      $region51: #{tpu_custom_call.1} parent=47 // pred_region
        %s1594 = smul.u32 16, %s23
      $region52: #{tpu_custom_call.1} parent=47 // pred_fallthru
        _
    $region48: #{tpu_custom_call.1} parent=5 // pred_fallthru
      _
    %p1595 = scmp.le.s32.totalorder 2, %s13
    // Predicated region
    $region53: #{tpu_custom_call.1} parent=5 // pred_check
      %p1596 = pneg %p1595
    $region54: #{tpu_custom_call.1} parent=5 // pred_check_branch
      %1598 = sbr.rel (%p1596) target = $region56
    $region55: #{tpu_custom_call.1} parent=5 // pred_region
      %s1599 = ssub.s32 %s13, 2
      // Predicated region
      $region57: #{tpu_custom_call.1} parent=55 // pred_check
        %p1600 = pneg %p208
      $region58: #{tpu_custom_call.1} parent=55 // pred_check_branch
        %1602 = sbr.rel (%p1600) target = $region60
      $region59: #{tpu_custom_call.1} parent=55 // pred_region
        %s1603 = smul.u32 16, %s25
        %p1604 = scmp.lt.s32.totalorder %s24, 1
        %s1605 = scalar_select %p1604, %s24, 1
        %p1606 = scmp.lt.s32.totalorder %s1603, 31
        %s1607 = scalar_select %p1606, %s1603, 31
        %s1608 = smul.addr %s1605, 32
        %s1609 = sadd.s32 %s1607, %s1608
        %s1610 = smul.addr %s1609, 8
        %s1611 = scalar_lea.vmem %s7, %s1610
      $region60: #{tpu_custom_call.1} parent=55 // pred_fallthru
        _
    $region56: #{tpu_custom_call.1} parent=5 // pred_fallthru
      _
  $region6: #{tpu_custom_call.1} parent=0 // loop_footer
    %s17 = sadd.s32 1, %s13
  $region7: #{tpu_custom_call.1} parent=0 // loop_footer_branch
    %12 = sbr.rel target = $region3
  $region8: #{tpu_custom_call.1} parent=0 // loop_exit
    _

</llo_original>
